<compile_context>
chip_gen: v7x
topology: tpu7x:2x2x1
jax: 0.10.0
libtpu: 0.0.40
codegen_flags: <defaults>
</compile_context>

<pallas_src>
from functools import partial

import jax
import jax.numpy as jnp
from jax import lax
from jax.experimental import pallas as pl
from jax.experimental.pallas import tpu as pltpu

EPS = 1e-5


def _relu_conv1x1_bn_kernel(x_ref, w_ref, gamma_ref, beta_ref, o_ref):
    # x_ref:     (Cin, M)    f32   channel-major activations (M = N*H*W)
    # w_ref:     (Cout, Cin) bf16  1x1 conv weight (native PyTorch orientation)
    # gamma_ref: (Cout, 1)   f32   BN scale
    # beta_ref:  (Cout, 1)   f32   BN shift
    # o_ref:     (Cout, M)   f32
    x = jnp.maximum(x_ref[...], 0.0).astype(jnp.bfloat16)        # ReLU (VPU) + bf16 cast
    y = jnp.dot(w_ref[...], x,
                preferred_element_type=jnp.float32)              # MXU: (Cout, M) f32

    # BatchNorm (training mode): one-pass biased statistics over axis=1 (XLU).
    inv_m = 1.0 / y.shape[1]
    mean = jnp.sum(y, axis=1, keepdims=True) * inv_m             # (Cout, 1)
    mean_sq = jnp.sum(y * y, axis=1, keepdims=True) * inv_m      # (Cout, 1)
    var = mean_sq - mean * mean
    inv_std = lax.rsqrt(var + EPS)                               # EUP

    scale = gamma_ref[...] * inv_std                             # (Cout, 1)
    shift = beta_ref[...] - mean * scale                         # (Cout, 1)
    o_ref[...] = (y * scale + shift).astype(o_ref.dtype)         # single FMA epilogue


@partial(jax.jit, static_argnames=())
def relu_conv1x1_bn(x_nchw, conv_w, gamma, beta):
    """x_nchw: (N, Cin, H, W); conv_w: (Cout, Cin, 1, 1); gamma/beta: (Cout,)"""
    n, cin, h, w = x_nchw.shape
    cout = conv_w.shape[0]
    m = n * h * w

    # Channel-major activations (Cin, M).  For N=1 this is a free reshape.
    if n == 1:
        x_cm = x_nchw.reshape(cin, m)
    else:
        x_cm = jnp.transpose(x_nchw, (1, 0, 2, 3)).reshape(cin, m)

    # Weight stays in PyTorch's (Cout, Cin) orientation; fed as bf16 (the cast
    # fuses into the jitted wrapper; in a real model it would be cast once).
    w_mat = conv_w.reshape(cout, cin).astype(jnp.bfloat16)
    gamma2 = gamma.reshape(cout, 1).astype(jnp.float32)
    beta2 = beta.reshape(cout, 1).astype(jnp.float32)

    bytes_accessed = (x_cm.size * 4 + w_mat.size * 2
                      + cout * m * 4 + 2 * cout * 4)
    cost = pl.CostEstimate(flops=2 * m * cin * cout,
                           transcendentals=0,
                           bytes_accessed=bytes_accessed)

    out_cm = pl.pallas_call(
        _relu_conv1x1_bn_kernel,
        out_shape=jax.ShapeDtypeStruct((cout, m), jnp.float32),
        in_specs=[
            pl.BlockSpec(memory_space=pltpu.MemorySpace.VMEM),
            pl.BlockSpec(memory_space=pltpu.MemorySpace.VMEM),
            pl.BlockSpec(memory_space=pltpu.MemorySpace.VMEM),
            pl.BlockSpec(memory_space=pltpu.MemorySpace.VMEM),
        ],
        out_specs=pl.BlockSpec(memory_space=pltpu.MemorySpace.VMEM),
        cost_estimate=cost,
    )(x_cm, w_mat, gamma2, beta2)

    # (Cout, M) -> NCHW with no transpose for N=1.
    if n == 1:
        return out_cm.reshape(1, cout, h, w)
    return jnp.transpose(out_cm.reshape(cout, n, h, w), (1, 0, 2, 3))


if __name__ == "__main__":
    # Shapes implied by the module's forward: x560 = randn([1, 1248, 7, 7])
    N, CIN, H, W = 1, 1248, 7, 7
    COUT = 128

    key = jax.random.PRNGKey(0)
    kx, kw = jax.random.split(key)

    x = jax.random.normal(kx, (N, CIN, H, W), dtype=jnp.float32)
    # Conv2d(1248, 128, 1, 1, bias=False) weight
    conv_w = jax.random.normal(kw, (COUT, CIN, 1, 1), dtype=jnp.float32) * 0.02
    # BatchNorm2d default init: weight (gamma) = 1, bias (beta) = 0
    gamma = jnp.ones((COUT,), dtype=jnp.float32)
    beta = jnp.zeros((COUT,), dtype=jnp.float32)

    # TODO(synk): BatchNorm2d training-mode running_mean/running_var buffer
    # updates are a module side effect and are not reproduced here.
    out = relu_conv1x1_bn(x, conv_w, gamma, beta)
    jax.block_until_ready(out)

    # Sanity check against a pure-JAX f32 reference (kernel uses bf16 matmul
    # operands with f32 accumulation, so allow a few e-3 of error).
    x_relu = jnp.maximum(x, 0.0)
    y_ref = jnp.einsum("nchw,oc->nohw", x_relu, conv_w.reshape(COUT, CIN))
    mean = jnp.mean(y_ref, axis=(0, 2, 3), keepdims=True)
    var = jnp.mean((y_ref - mean) ** 2, axis=(0, 2, 3), keepdims=True)
    ref = gamma.reshape(1, COUT, 1, 1) * (y_ref - mean) / jnp.sqrt(var + EPS) \
        + beta.reshape(1, COUT, 1, 1)

    assert out.shape == (N, COUT, H, W)
    err = jnp.abs(out - ref)
    assert jnp.max(err) < 2e-2, f"max err {jnp.max(err)}"
    assert jnp.mean(err) < 5e-3, f"mean err {jnp.mean(err)}"

    print("KERNEL_OK")
</pallas_src>

<mosaic_0001>
module attributes {stable_mosaic.version = 11 : i64} {
  func.func @_relu_conv1x1_bn_kernel(%arg0: memref<1248x49xf32, #tpu.memory_space<vmem>>, %arg1: memref<128x1248xbf16, #tpu.memory_space<vmem>>, %arg2: memref<128x1xf32, #tpu.memory_space<vmem>>, %arg3: memref<128x1xf32, #tpu.memory_space<vmem>>, %arg4: memref<128x49xf32, #tpu.memory_space<vmem>>) attributes {dimension_semantics = [], scalar_prefetch = 0 : i64, scratch_operands = 0 : i64, tpu.core_type = #tpu.core_type<tc>} {
    %c0 = arith.constant 0 : index
    %c0_0 = arith.constant 0 : index
    %0 = vector.load %arg0[%c0, %c0_0] : memref<1248x49xf32, #tpu.memory_space<vmem>>, vector<1248x49xf32>
    %cst = arith.constant 0.000000e+00 : f32
    %1 = vector.broadcast %cst : f32 to vector<1248x49xf32>
    %2 = arith.maximumf %0, %1 : vector<1248x49xf32>
    %3 = arith.truncf %2 : vector<1248x49xf32> to vector<1248x49xbf16>
    %c0_1 = arith.constant 0 : index
    %c0_2 = arith.constant 0 : index
    %4 = vector.load %arg1[%c0_1, %c0_2] : memref<128x1248xbf16, #tpu.memory_space<vmem>>, vector<128x1248xbf16>
    %cst_3 = arith.constant dense<0.000000e+00> : vector<128x49xf32>
    %5 = tpu.matmul %4, %3, %cst_3 {dimension_numbers = #tpu.dot_dimension_numbers<[1], [0], [0], [1], [0, 0, 1, 1], [], []>} : vector<128x1248xbf16>, vector<1248x49xbf16>, vector<128x49xf32> -> vector<128x49xf32>
    %cst_4 = arith.constant dense<0.000000e+00> : vector<128xf32>
    %6 = vector.multi_reduction <add>, %5, %cst_4 [1] : vector<128x49xf32> to vector<128xf32>
    %7 = vector.shape_cast %6 : vector<128xf32> to vector<128x1xf32>
    %cst_5 = arith.constant 0.0204081628 : f32
    %8 = vector.broadcast %cst_5 : f32 to vector<128x1xf32>
    %9 = arith.mulf %7, %8 : vector<128x1xf32>
    %10 = arith.mulf %5, %5 : vector<128x49xf32>
    %cst_6 = arith.constant dense<0.000000e+00> : vector<128xf32>
    %11 = vector.multi_reduction <add>, %10, %cst_6 [1] : vector<128x49xf32> to vector<128xf32>
    %12 = vector.shape_cast %11 : vector<128xf32> to vector<128x1xf32>
    %cst_7 = arith.constant 0.0204081628 : f32
    %13 = vector.broadcast %cst_7 : f32 to vector<128x1xf32>
    %14 = arith.mulf %12, %13 : vector<128x1xf32>
    %15 = arith.mulf %9, %9 : vector<128x1xf32>
    %16 = arith.subf %14, %15 : vector<128x1xf32>
    %cst_8 = arith.constant 9.99999974E-6 : f32
    %17 = vector.broadcast %cst_8 : f32 to vector<128x1xf32>
    %18 = arith.addf %16, %17 : vector<128x1xf32>
    %19 = math.rsqrt %18 : vector<128x1xf32>
    %c0_9 = arith.constant 0 : index
    %c0_10 = arith.constant 0 : index
    %20 = vector.load %arg2[%c0_9, %c0_10] : memref<128x1xf32, #tpu.memory_space<vmem>>, vector<128x1xf32>
    %21 = arith.mulf %20, %19 : vector<128x1xf32>
    %c0_11 = arith.constant 0 : index
    %c0_12 = arith.constant 0 : index
    %22 = vector.load %arg3[%c0_11, %c0_12] : memref<128x1xf32, #tpu.memory_space<vmem>>, vector<128x1xf32>
    %23 = arith.mulf %9, %21 : vector<128x1xf32>
    %24 = arith.subf %22, %23 : vector<128x1xf32>
    %25 = vector.broadcast %21 : vector<128x1xf32> to vector<128x49xf32>
    %26 = arith.mulf %5, %25 : vector<128x49xf32>
    %27 = vector.broadcast %24 : vector<128x1xf32> to vector<128x49xf32>
    %28 = arith.addf %26, %27 : vector<128x49xf32>
    %c0_13 = arith.constant 0 : index
    %c0_14 = arith.constant 0 : index
    %29 = vector.load %arg4[%c0_13, %c0_14] : memref<128x49xf32, #tpu.memory_space<vmem>>, vector<128x49xf32>
    tpu.vector_store %arg4[%c0_13, %c0_14], %28 {strides = array<i32>} : memref<128x49xf32, #tpu.memory_space<vmem>>, vector<128x49xf32>,
    return
  }
}

</mosaic_0001>

<llo_original>
// kernel: relu_conv1x1_bn.1
$region0: #{relu_conv1x1_bn.1}
  #allocation0 [shape = 'u32[]', space=smem, size = 0x4, offset = 0x4, fixed_abs, tag = 'smem constant byte address 0x4 - core index']
  #allocation1 [shape = 'u32[144,128]{1,0:T(1,128)}', space=vmem, size = 0x12000, scoped, tag = 'internal scratch']
  %s0 = inlined_call_operand.vmem [shape: f32[1248,49], index: 0, kind: input, shape index: {}]
  %s1 = inlined_call_operand.vmem [shape: bf16[128,1248], index: 1, kind: input, shape index: {}]
  %s2 = inlined_call_operand.vmem [shape: f32[128,1], index: 2, kind: input, shape index: {}]
  %s3 = inlined_call_operand.vmem [shape: f32[128,1], index: 3, kind: input, shape index: {}]
  %s4 = inlined_call_operand.vmem [shape: f32[128,49], index: 4, kind: output, shape index: {}]
  %s5 = sld [smem:[#allocation0]]
  $region26: #{relu_conv1x1_bn.1} parent=0
    _
  %s7 = ssub.s32 1, %s5
  %s8 = scalar_select 0, %s7, %s5
  // Predicated region
  $region2: #{relu_conv1x1_bn.1} parent=0 // pred_check
    _
  $region3: #{relu_conv1x1_bn.1} parent=0 // pred_check_branch
    %10 = sbr.rel (0) target = $region5
  $region4: #{relu_conv1x1_bn.1} parent=0 // pred_region
    _
  $region5: #{relu_conv1x1_bn.1} parent=0 // pred_fallthru
    _
  // Predicated region
  $region6: #{relu_conv1x1_bn.1} parent=0 // pred_check
    _
  $region7: #{relu_conv1x1_bn.1} parent=0 // pred_check_branch
    %12 = sbr.rel (0) target = $region9
  $region8: #{relu_conv1x1_bn.1} parent=0 // pred_region
    _
  $region9: #{relu_conv1x1_bn.1} parent=0 // pred_fallthru
    _
  // Predicated region
  $region10: #{relu_conv1x1_bn.1} parent=0 // pred_check
    _
  $region11: #{relu_conv1x1_bn.1} parent=0 // pred_check_branch
    %14 = sbr.rel (0) target = $region13
  $region12: #{relu_conv1x1_bn.1} parent=0 // pred_region
    _
  $region13: #{relu_conv1x1_bn.1} parent=0 // pred_fallthru
    _
  // Predicated region
  $region14: #{relu_conv1x1_bn.1} parent=0 // pred_check
    _
  $region15: #{relu_conv1x1_bn.1} parent=0 // pred_check_branch
    %16 = sbr.rel (0) target = $region17
  $region16: #{relu_conv1x1_bn.1} parent=0 // pred_region
    _
  $region17: #{relu_conv1x1_bn.1} parent=0 // pred_fallthru
    _
  %v18 = vld [vmem:[%s0] sm:$0xff]
  %v19 = vld [vmem:[%s0 + $0x8] sm:$0xff]
  %v20 = vld [vmem:[%s0 + $0x10] sm:$0xff]
  %v21 = vld [vmem:[%s0 + $0x18] sm:$0xff]
  %v22 = vld [vmem:[%s0 + $0x20] sm:$0xff]
  %v23 = vld [vmem:[%s0 + $0x28] sm:$0xff]
  %v24 = vld [vmem:[%s0 + $0x30] sm:$0xff]
  %v25 = vld [vmem:[%s0 + $0x38] sm:$0xff]
  %v26 = vld [vmem:[%s0 + $0x40] sm:$0xff]
  %v27 = vld [vmem:[%s0 + $0x48] sm:$0xff]
  %v28 = vld [vmem:[%s0 + $0x50] sm:$0xff]
  %v29 = vld [vmem:[%s0 + $0x58] sm:$0xff]
  %v30 = vld [vmem:[%s0 + $0x60] sm:$0xff]
  %v31 = vld [vmem:[%s0 + $0x68] sm:$0xff]
  %v32 = vld [vmem:[%s0 + $0x70] sm:$0xff]
  %v33 = vld [vmem:[%s0 + $0x78] sm:$0xff]
  %v34 = vld [vmem:[%s0 + $0x80] sm:$0xff]
  %v35 = vld [vmem:[%s0 + $0x88] sm:$0xff]
  %v36 = vld [vmem:[%s0 + $0x90] sm:$0xff]
  %v37 = vld [vmem:[%s0 + $0x98] sm:$0xff]
  %v38 = vld [vmem:[%s0 + $0xa0] sm:$0xff]
  %v39 = vld [vmem:[%s0 + $0xa8] sm:$0xff]
  %v40 = vld [vmem:[%s0 + $0xb0] sm:$0xff]
  %v41 = vld [vmem:[%s0 + $0xb8] sm:$0xff]
  %v42 = vld [vmem:[%s0 + $0xc0] sm:$0xff]
  %v43 = vld [vmem:[%s0 + $0xc8] sm:$0xff]
  %v44 = vld [vmem:[%s0 + $0xd0] sm:$0xff]
  %v45 = vld [vmem:[%s0 + $0xd8] sm:$0xff]
  %v46 = vld [vmem:[%s0 + $0xe0] sm:$0xff]
  %v47 = vld [vmem:[%s0 + $0xe8] sm:$0xff]
  %v48 = vld [vmem:[%s0 + $0xf0] sm:$0xff]
  %v49 = vld [vmem:[%s0 + $0xf8] sm:$0xff]
  %v50 = vld [vmem:[%s0 + $0x100] sm:$0xff]
  %v51 = vld [vmem:[%s0 + $0x108] sm:$0xff]
  %v52 = vld [vmem:[%s0 + $0x110] sm:$0xff]
  %v53 = vld [vmem:[%s0 + $0x118] sm:$0xff]
  %v54 = vld [vmem:[%s0 + $0x120] sm:$0xff]
  %v55 = vld [vmem:[%s0 + $0x128] sm:$0xff]
  %v56 = vld [vmem:[%s0 + $0x130] sm:$0xff]
  %v57 = vld [vmem:[%s0 + $0x138] sm:$0xff]
  %v58 = vld [vmem:[%s0 + $0x140] sm:$0xff]
  %v59 = vld [vmem:[%s0 + $0x148] sm:$0xff]
  %v60 = vld [vmem:[%s0 + $0x150] sm:$0xff]
  %v61 = vld [vmem:[%s0 + $0x158] sm:$0xff]
  %v62 = vld [vmem:[%s0 + $0x160] sm:$0xff]
  %v63 = vld [vmem:[%s0 + $0x168] sm:$0xff]
  %v64 = vld [vmem:[%s0 + $0x170] sm:$0xff]
  %v65 = vld [vmem:[%s0 + $0x178] sm:$0xff]
  %v66 = vld [vmem:[%s0 + $0x180] sm:$0xff]
  %v67 = vld [vmem:[%s0 + $0x188] sm:$0xff]
  %v68 = vld [vmem:[%s0 + $0x190] sm:$0xff]
  %v69 = vld [vmem:[%s0 + $0x198] sm:$0xff]
  %v70 = vld [vmem:[%s0 + $0x1a0] sm:$0xff]
  %v71 = vld [vmem:[%s0 + $0x1a8] sm:$0xff]
  %v72 = vld [vmem:[%s0 + $0x1b0] sm:$0xff]
  %v73 = vld [vmem:[%s0 + $0x1b8] sm:$0xff]
  %v74 = vld [vmem:[%s0 + $0x1c0] sm:$0xff]
  %v75 = vld [vmem:[%s0 + $0x1c8] sm:$0xff]
  %v76 = vld [vmem:[%s0 + $0x1d0] sm:$0xff]
  %v77 = vld [vmem:[%s0 + $0x1d8] sm:$0xff]
  %v78 = vld [vmem:[%s0 + $0x1e0] sm:$0xff]
  %v79 = vld [vmem:[%s0 + $0x1e8] sm:$0xff]
  %v80 = vld [vmem:[%s0 + $0x1f0] sm:$0xff]
  %v81 = vld [vmem:[%s0 + $0x1f8] sm:$0xff]
  %v82 = vld [vmem:[%s0 + $0x200] sm:$0xff]
  %v83 = vld [vmem:[%s0 + $0x208] sm:$0xff]
  %v84 = vld [vmem:[%s0 + $0x210] sm:$0xff]
  %v85 = vld [vmem:[%s0 + $0x218] sm:$0xff]
  %v86 = vld [vmem:[%s0 + $0x220] sm:$0xff]
  %v87 = vld [vmem:[%s0 + $0x228] sm:$0xff]
  %v88 = vld [vmem:[%s0 + $0x230] sm:$0xff]
  %v89 = vld [vmem:[%s0 + $0x238] sm:$0xff]
  %v90 = vld [vmem:[%s0 + $0x240] sm:$0xff]
  %v91 = vld [vmem:[%s0 + $0x248] sm:$0xff]
  %v92 = vld [vmem:[%s0 + $0x250] sm:$0xff]
  %v93 = vld [vmem:[%s0 + $0x258] sm:$0xff]
  %v94 = vld [vmem:[%s0 + $0x260] sm:$0xff]
  %v95 = vld [vmem:[%s0 + $0x268] sm:$0xff]
  %v96 = vld [vmem:[%s0 + $0x270] sm:$0xff]
  %v97 = vld [vmem:[%s0 + $0x278] sm:$0xff]
  %v98 = vld [vmem:[%s0 + $0x280] sm:$0xff]
  %v99 = vld [vmem:[%s0 + $0x288] sm:$0xff]
  %v100 = vld [vmem:[%s0 + $0x290] sm:$0xff]
  %v101 = vld [vmem:[%s0 + $0x298] sm:$0xff]
  %v102 = vld [vmem:[%s0 + $0x2a0] sm:$0xff]
  %v103 = vld [vmem:[%s0 + $0x2a8] sm:$0xff]
  %v104 = vld [vmem:[%s0 + $0x2b0] sm:$0xff]
  %v105 = vld [vmem:[%s0 + $0x2b8] sm:$0xff]
  %v106 = vld [vmem:[%s0 + $0x2c0] sm:$0xff]
  %v107 = vld [vmem:[%s0 + $0x2c8] sm:$0xff]
  %v108 = vld [vmem:[%s0 + $0x2d0] sm:$0xff]
  %v109 = vld [vmem:[%s0 + $0x2d8] sm:$0xff]
  %v110 = vld [vmem:[%s0 + $0x2e0] sm:$0xff]
  %v111 = vld [vmem:[%s0 + $0x2e8] sm:$0xff]
  %v112 = vld [vmem:[%s0 + $0x2f0] sm:$0xff]
  %v113 = vld [vmem:[%s0 + $0x2f8] sm:$0xff]
  %v114 = vld [vmem:[%s0 + $0x300] sm:$0xff]
  %v115 = vld [vmem:[%s0 + $0x308] sm:$0xff]
  %v116 = vld [vmem:[%s0 + $0x310] sm:$0xff]
  %v117 = vld [vmem:[%s0 + $0x318] sm:$0xff]
  %v118 = vld [vmem:[%s0 + $0x320] sm:$0xff]
  %v119 = vld [vmem:[%s0 + $0x328] sm:$0xff]
  %v120 = vld [vmem:[%s0 + $0x330] sm:$0xff]
  %v121 = vld [vmem:[%s0 + $0x338] sm:$0xff]
  %v122 = vld [vmem:[%s0 + $0x340] sm:$0xff]
  %v123 = vld [vmem:[%s0 + $0x348] sm:$0xff]
  %v124 = vld [vmem:[%s0 + $0x350] sm:$0xff]
  %v125 = vld [vmem:[%s0 + $0x358] sm:$0xff]
  %v126 = vld [vmem:[%s0 + $0x360] sm:$0xff]
  %v127 = vld [vmem:[%s0 + $0x368] sm:$0xff]
  %v128 = vld [vmem:[%s0 + $0x370] sm:$0xff]
  %v129 = vld [vmem:[%s0 + $0x378] sm:$0xff]
  %v130 = vld [vmem:[%s0 + $0x380] sm:$0xff]
  %v131 = vld [vmem:[%s0 + $0x388] sm:$0xff]
  %v132 = vld [vmem:[%s0 + $0x390] sm:$0xff]
  %v133 = vld [vmem:[%s0 + $0x398] sm:$0xff]
  %v134 = vld [vmem:[%s0 + $0x3a0] sm:$0xff]
  %v135 = vld [vmem:[%s0 + $0x3a8] sm:$0xff]
  %v136 = vld [vmem:[%s0 + $0x3b0] sm:$0xff]
  %v137 = vld [vmem:[%s0 + $0x3b8] sm:$0xff]
  %v138 = vld [vmem:[%s0 + $0x3c0] sm:$0xff]
  %v139 = vld [vmem:[%s0 + $0x3c8] sm:$0xff]
  %v140 = vld [vmem:[%s0 + $0x3d0] sm:$0xff]
  %v141 = vld [vmem:[%s0 + $0x3d8] sm:$0xff]
  %v142 = vld [vmem:[%s0 + $0x3e0] sm:$0xff]
  %v143 = vld [vmem:[%s0 + $0x3e8] sm:$0xff]
  %v144 = vld [vmem:[%s0 + $0x3f0] sm:$0xff]
  %v145 = vld [vmem:[%s0 + $0x3f8] sm:$0xff]
  %v146 = vld [vmem:[%s0 + $0x400] sm:$0xff]
  %v147 = vld [vmem:[%s0 + $0x408] sm:$0xff]
  %v148 = vld [vmem:[%s0 + $0x410] sm:$0xff]
  %v149 = vld [vmem:[%s0 + $0x418] sm:$0xff]
  %v150 = vld [vmem:[%s0 + $0x420] sm:$0xff]
  %v151 = vld [vmem:[%s0 + $0x428] sm:$0xff]
  %v152 = vld [vmem:[%s0 + $0x430] sm:$0xff]
  %v153 = vld [vmem:[%s0 + $0x438] sm:$0xff]
  %v154 = vld [vmem:[%s0 + $0x440] sm:$0xff]
  %v155 = vld [vmem:[%s0 + $0x448] sm:$0xff]
  %v156 = vld [vmem:[%s0 + $0x450] sm:$0xff]
  %v157 = vld [vmem:[%s0 + $0x458] sm:$0xff]
  %v158 = vld [vmem:[%s0 + $0x460] sm:$0xff]
  %v159 = vld [vmem:[%s0 + $0x468] sm:$0xff]
  %v160 = vld [vmem:[%s0 + $0x470] sm:$0xff]
  %v161 = vld [vmem:[%s0 + $0x478] sm:$0xff]
  %v162 = vld [vmem:[%s0 + $0x480] sm:$0xff]
  %v163 = vld [vmem:[%s0 + $0x488] sm:$0xff]
  %v164 = vld [vmem:[%s0 + $0x490] sm:$0xff]
  %v165 = vld [vmem:[%s0 + $0x498] sm:$0xff]
  %v166 = vld [vmem:[%s0 + $0x4a0] sm:$0xff]
  %v167 = vld [vmem:[%s0 + $0x4a8] sm:$0xff]
  %v168 = vld [vmem:[%s0 + $0x4b0] sm:$0xff]
  %v169 = vld [vmem:[%s0 + $0x4b8] sm:$0xff]
  %v170 = vld [vmem:[%s0 + $0x4c0] sm:$0xff]
  %v171 = vld [vmem:[%s0 + $0x4c8] sm:$0xff]
  %v172 = vld [vmem:[%s0 + $0x4d0] sm:$0xff]
  %v173 = vld [vmem:[%s0 + $0x4d8] sm:$0xff]
  %v174 = vmax.f32 %v18, 0.0
  %v175 = vmax.f32 %v19, 0.0
  %v176 = vmax.f32 %v20, 0.0
  %v177 = vmax.f32 %v21, 0.0
  %v178 = vmax.f32 %v22, 0.0
  %v179 = vmax.f32 %v23, 0.0
  %v180 = vmax.f32 %v24, 0.0
  %v181 = vmax.f32 %v25, 0.0
  %v182 = vmax.f32 %v26, 0.0
  %v183 = vmax.f32 %v27, 0.0
  %v184 = vmax.f32 %v28, 0.0
  %v185 = vmax.f32 %v29, 0.0
  %v186 = vmax.f32 %v30, 0.0
  %v187 = vmax.f32 %v31, 0.0
  %v188 = vmax.f32 %v32, 0.0
  %v189 = vmax.f32 %v33, 0.0
  %v190 = vmax.f32 %v34, 0.0
  %v191 = vmax.f32 %v35, 0.0
  %v192 = vmax.f32 %v36, 0.0
  %v193 = vmax.f32 %v37, 0.0
  %v194 = vmax.f32 %v38, 0.0
  %v195 = vmax.f32 %v39, 0.0
  %v196 = vmax.f32 %v40, 0.0
  %v197 = vmax.f32 %v41, 0.0
  %v198 = vmax.f32 %v42, 0.0
  %v199 = vmax.f32 %v43, 0.0
  %v200 = vmax.f32 %v44, 0.0
  %v201 = vmax.f32 %v45, 0.0
  %v202 = vmax.f32 %v46, 0.0
  %v203 = vmax.f32 %v47, 0.0
  %v204 = vmax.f32 %v48, 0.0
  %v205 = vmax.f32 %v49, 0.0
  %v206 = vmax.f32 %v50, 0.0
  %v207 = vmax.f32 %v51, 0.0
  %v208 = vmax.f32 %v52, 0.0
  %v209 = vmax.f32 %v53, 0.0
  %v210 = vmax.f32 %v54, 0.0
  %v211 = vmax.f32 %v55, 0.0
  %v212 = vmax.f32 %v56, 0.0
  %v213 = vmax.f32 %v57, 0.0
  %v214 = vmax.f32 %v58, 0.0
  %v215 = vmax.f32 %v59, 0.0
  %v216 = vmax.f32 %v60, 0.0
  %v217 = vmax.f32 %v61, 0.0
  %v218 = vmax.f32 %v62, 0.0
  %v219 = vmax.f32 %v63, 0.0
  %v220 = vmax.f32 %v64, 0.0
  %v221 = vmax.f32 %v65, 0.0
  %v222 = vmax.f32 %v66, 0.0
  %v223 = vmax.f32 %v67, 0.0
  %v224 = vmax.f32 %v68, 0.0
  %v225 = vmax.f32 %v69, 0.0
  %v226 = vmax.f32 %v70, 0.0
  %v227 = vmax.f32 %v71, 0.0
  %v228 = vmax.f32 %v72, 0.0
  %v229 = vmax.f32 %v73, 0.0
  %v230 = vmax.f32 %v74, 0.0
  %v231 = vmax.f32 %v75, 0.0
  %v232 = vmax.f32 %v76, 0.0
  %v233 = vmax.f32 %v77, 0.0
  %v234 = vmax.f32 %v78, 0.0
  %v235 = vmax.f32 %v79, 0.0
  %v236 = vmax.f32 %v80, 0.0
  %v237 = vmax.f32 %v81, 0.0
  %v238 = vmax.f32 %v82, 0.0
  %v239 = vmax.f32 %v83, 0.0
  %v240 = vmax.f32 %v84, 0.0
  %v241 = vmax.f32 %v85, 0.0
  %v242 = vmax.f32 %v86, 0.0
  %v243 = vmax.f32 %v87, 0.0
  %v244 = vmax.f32 %v88, 0.0
  %v245 = vmax.f32 %v89, 0.0
  %v246 = vmax.f32 %v90, 0.0
  %v247 = vmax.f32 %v91, 0.0
  %v248 = vmax.f32 %v92, 0.0
  %v249 = vmax.f32 %v93, 0.0
  %v250 = vmax.f32 %v94, 0.0
  %v251 = vmax.f32 %v95, 0.0
  %v252 = vmax.f32 %v96, 0.0
  %v253 = vmax.f32 %v97, 0.0
  %v254 = vmax.f32 %v98, 0.0
  %v255 = vmax.f32 %v99, 0.0
  %v256 = vmax.f32 %v100, 0.0
  %v257 = vmax.f32 %v101, 0.0
  %v258 = vmax.f32 %v102, 0.0
  %v259 = vmax.f32 %v103, 0.0
  %v260 = vmax.f32 %v104, 0.0
  %v261 = vmax.f32 %v105, 0.0
  %v262 = vmax.f32 %v106, 0.0
  %v263 = vmax.f32 %v107, 0.0
  %v264 = vmax.f32 %v108, 0.0
  %v265 = vmax.f32 %v109, 0.0
  %v266 = vmax.f32 %v110, 0.0
  %v267 = vmax.f32 %v111, 0.0
  %v268 = vmax.f32 %v112, 0.0
  %v269 = vmax.f32 %v113, 0.0
  %v270 = vmax.f32 %v114, 0.0
  %v271 = vmax.f32 %v115, 0.0
  %v272 = vmax.f32 %v116, 0.0
  %v273 = vmax.f32 %v117, 0.0
  %v274 = vmax.f32 %v118, 0.0
  %v275 = vmax.f32 %v119, 0.0
  %v276 = vmax.f32 %v120, 0.0
  %v277 = vmax.f32 %v121, 0.0
  %v278 = vmax.f32 %v122, 0.0
  %v279 = vmax.f32 %v123, 0.0
  %v280 = vmax.f32 %v124, 0.0
  %v281 = vmax.f32 %v125, 0.0
  %v282 = vmax.f32 %v126, 0.0
  %v283 = vmax.f32 %v127, 0.0
  %v284 = vmax.f32 %v128, 0.0
  %v285 = vmax.f32 %v129, 0.0
  %v286 = vmax.f32 %v130, 0.0
  %v287 = vmax.f32 %v131, 0.0
  %v288 = vmax.f32 %v132, 0.0
  %v289 = vmax.f32 %v133, 0.0
  %v290 = vmax.f32 %v134, 0.0
  %v291 = vmax.f32 %v135, 0.0
  %v292 = vmax.f32 %v136, 0.0
  %v293 = vmax.f32 %v137, 0.0
  %v294 = vmax.f32 %v138, 0.0
  %v295 = vmax.f32 %v139, 0.0
  %v296 = vmax.f32 %v140, 0.0
  %v297 = vmax.f32 %v141, 0.0
  %v298 = vmax.f32 %v142, 0.0
  %v299 = vmax.f32 %v143, 0.0
  %v300 = vmax.f32 %v144, 0.0
  %v301 = vmax.f32 %v145, 0.0
  %v302 = vmax.f32 %v146, 0.0
  %v303 = vmax.f32 %v147, 0.0
  %v304 = vmax.f32 %v148, 0.0
  %v305 = vmax.f32 %v149, 0.0
  %v306 = vmax.f32 %v150, 0.0
  %v307 = vmax.f32 %v151, 0.0
  %v308 = vmax.f32 %v152, 0.0
  %v309 = vmax.f32 %v153, 0.0
  %v310 = vmax.f32 %v154, 0.0
  %v311 = vmax.f32 %v155, 0.0
  %v312 = vmax.f32 %v156, 0.0
  %v313 = vmax.f32 %v157, 0.0
  %v314 = vmax.f32 %v158, 0.0
  %v315 = vmax.f32 %v159, 0.0
  %v316 = vmax.f32 %v160, 0.0
  %v317 = vmax.f32 %v161, 0.0
  %v318 = vmax.f32 %v162, 0.0
  %v319 = vmax.f32 %v163, 0.0
  %v320 = vmax.f32 %v164, 0.0
  %v321 = vmax.f32 %v165, 0.0
  %v322 = vmax.f32 %v166, 0.0
  %v323 = vmax.f32 %v167, 0.0
  %v324 = vmax.f32 %v168, 0.0
  %v325 = vmax.f32 %v169, 0.0
  %v326 = vmax.f32 %v170, 0.0
  %v327 = vmax.f32 %v171, 0.0
  %v328 = vmax.f32 %v172, 0.0
  %v329 = vmax.f32 %v173, 0.0
  %v330 = vpack.c.bf16 %v175, %v174
  %v331 = vpack.c.bf16 %v177, %v176
  %v332 = vpack.c.bf16 %v179, %v178
  %v333 = vpack.c.bf16 %v181, %v180
  %v334 = vpack.c.bf16 %v183, %v182
  %v335 = vpack.c.bf16 %v185, %v184
  %v336 = vpack.c.bf16 %v187, %v186
  %v337 = vpack.c.bf16 %v189, %v188
  %v338 = vpack.c.bf16 %v191, %v190
  %v339 = vpack.c.bf16 %v193, %v192
  %v340 = vpack.c.bf16 %v195, %v194
  %v341 = vpack.c.bf16 %v197, %v196
  %v342 = vpack.c.bf16 %v199, %v198
  %v343 = vpack.c.bf16 %v201, %v200
  %v344 = vpack.c.bf16 %v203, %v202
  %v345 = vpack.c.bf16 %v205, %v204
  %v346 = vpack.c.bf16 %v207, %v206
  %v347 = vpack.c.bf16 %v209, %v208
  %v348 = vpack.c.bf16 %v211, %v210
  %v349 = vpack.c.bf16 %v213, %v212
  %v350 = vpack.c.bf16 %v215, %v214
  %v351 = vpack.c.bf16 %v217, %v216
  %v352 = vpack.c.bf16 %v219, %v218
  %v353 = vpack.c.bf16 %v221, %v220
  %v354 = vpack.c.bf16 %v223, %v222
  %v355 = vpack.c.bf16 %v225, %v224
  %v356 = vpack.c.bf16 %v227, %v226
  %v357 = vpack.c.bf16 %v229, %v228
  %v358 = vpack.c.bf16 %v231, %v230
  %v359 = vpack.c.bf16 %v233, %v232
  %v360 = vpack.c.bf16 %v235, %v234
  %v361 = vpack.c.bf16 %v237, %v236
  %v362 = vpack.c.bf16 %v239, %v238
  %v363 = vpack.c.bf16 %v241, %v240
  %v364 = vpack.c.bf16 %v243, %v242
  %v365 = vpack.c.bf16 %v245, %v244
  %v366 = vpack.c.bf16 %v247, %v246
  %v367 = vpack.c.bf16 %v249, %v248
  %v368 = vpack.c.bf16 %v251, %v250
  %v369 = vpack.c.bf16 %v253, %v252
  %v370 = vpack.c.bf16 %v255, %v254
  %v371 = vpack.c.bf16 %v257, %v256
  %v372 = vpack.c.bf16 %v259, %v258
  %v373 = vpack.c.bf16 %v261, %v260
  %v374 = vpack.c.bf16 %v263, %v262
  %v375 = vpack.c.bf16 %v265, %v264
  %v376 = vpack.c.bf16 %v267, %v266
  %v377 = vpack.c.bf16 %v269, %v268
  %v378 = vpack.c.bf16 %v271, %v270
  %v379 = vpack.c.bf16 %v273, %v272
  %v380 = vpack.c.bf16 %v275, %v274
  %v381 = vpack.c.bf16 %v277, %v276
  %v382 = vpack.c.bf16 %v279, %v278
  %v383 = vpack.c.bf16 %v281, %v280
  %v384 = vpack.c.bf16 %v283, %v282
  %v385 = vpack.c.bf16 %v285, %v284
  %v386 = vpack.c.bf16 %v287, %v286
  %v387 = vpack.c.bf16 %v289, %v288
  %v388 = vpack.c.bf16 %v291, %v290
  %v389 = vpack.c.bf16 %v293, %v292
  %v390 = vpack.c.bf16 %v295, %v294
  %v391 = vpack.c.bf16 %v297, %v296
  %v392 = vpack.c.bf16 %v299, %v298
  %v393 = vpack.c.bf16 %v301, %v300
  %v394 = vpack.c.bf16 %v303, %v302
  %v395 = vpack.c.bf16 %v305, %v304
  %v396 = vpack.c.bf16 %v307, %v306
  %v397 = vpack.c.bf16 %v309, %v308
  %v398 = vpack.c.bf16 %v311, %v310
  %v399 = vpack.c.bf16 %v313, %v312
  %v400 = vpack.c.bf16 %v315, %v314
  %v401 = vpack.c.bf16 %v317, %v316
  %v402 = vpack.c.bf16 %v319, %v318
  %v403 = vpack.c.bf16 %v321, %v320
  %v404 = vpack.c.bf16 %v323, %v322
  %v405 = vpack.c.bf16 %v325, %v324
  %v406 = vpack.c.bf16 %v327, %v326
  %v407 = vpack.c.bf16 %v329, %v328
  %v408 = vld [vmem:[%s1] sm:$0xff]
  %v409 = vld [vmem:[%s1 + $0x8] sm:$0xff]
  %v410 = vld [vmem:[%s1 + $0x10] sm:$0xff]
  %v411 = vld [vmem:[%s1 + $0x18] sm:$0xff]
  %v412 = vld [vmem:[%s1 + $0x20] sm:$0xff]
  %v413 = vld [vmem:[%s1 + $0x28] sm:$0xff]
  %v414 = vld [vmem:[%s1 + $0x30] sm:$0xff]
  %v415 = vld [vmem:[%s1 + $0x38] sm:$0xff]
  %v416 = vld [vmem:[%s1 + $0x40] sm:$0xff]
  %v417 = vld [vmem:[%s1 + $0x48] sm:$0xff]
  %v418 = vld [vmem:[%s1 + $0x50] sm:$0xff]
  %v419 = vld [vmem:[%s1 + $0x58] sm:$0xff]
  %v420 = vld [vmem:[%s1 + $0x60] sm:$0xff]
  %v421 = vld [vmem:[%s1 + $0x68] sm:$0xff]
  %v422 = vld [vmem:[%s1 + $0x70] sm:$0xff]
  %v423 = vld [vmem:[%s1 + $0x78] sm:$0xff]
  %v424 = vld [vmem:[%s1 + $0x80] sm:$0xff]
  %v425 = vld [vmem:[%s1 + $0x88] sm:$0xff]
  %v426 = vld [vmem:[%s1 + $0x90] sm:$0xff]
  %v427 = vld [vmem:[%s1 + $0x98] sm:$0xff]
  %v428 = vld [vmem:[%s1 + $0xa0] sm:$0xff]
  %v429 = vld [vmem:[%s1 + $0xa8] sm:$0xff]
  %v430 = vld [vmem:[%s1 + $0xb0] sm:$0xff]
  %v431 = vld [vmem:[%s1 + $0xb8] sm:$0xff]
  %v432 = vld [vmem:[%s1 + $0xc0] sm:$0xff]
  %v433 = vld [vmem:[%s1 + $0xc8] sm:$0xff]
  %v434 = vld [vmem:[%s1 + $0xd0] sm:$0xff]
  %v435 = vld [vmem:[%s1 + $0xd8] sm:$0xff]
  %v436 = vld [vmem:[%s1 + $0xe0] sm:$0xff]
  %v437 = vld [vmem:[%s1 + $0xe8] sm:$0xff]
  %v438 = vld [vmem:[%s1 + $0xf0] sm:$0xff]
  %v439 = vld [vmem:[%s1 + $0xf8] sm:$0xff]
  %v440 = vld [vmem:[%s1 + $0x100] sm:$0xff]
  %v441 = vld [vmem:[%s1 + $0x108] sm:$0xff]
  %v442 = vld [vmem:[%s1 + $0x110] sm:$0xff]
  %v443 = vld [vmem:[%s1 + $0x118] sm:$0xff]
  %v444 = vld [vmem:[%s1 + $0x120] sm:$0xff]
  %v445 = vld [vmem:[%s1 + $0x128] sm:$0xff]
  %v446 = vld [vmem:[%s1 + $0x130] sm:$0xff]
  %v447 = vld [vmem:[%s1 + $0x138] sm:$0xff]
  %v448 = vld [vmem:[%s1 + $0x140] sm:$0xff]
  %v449 = vld [vmem:[%s1 + $0x148] sm:$0xff]
  %v450 = vld [vmem:[%s1 + $0x150] sm:$0xff]
  %v451 = vld [vmem:[%s1 + $0x158] sm:$0xff]
  %v452 = vld [vmem:[%s1 + $0x160] sm:$0xff]
  %v453 = vld [vmem:[%s1 + $0x168] sm:$0xff]
  %v454 = vld [vmem:[%s1 + $0x170] sm:$0xff]
  %v455 = vld [vmem:[%s1 + $0x178] sm:$0xff]
  %v456 = vld [vmem:[%s1 + $0x180] sm:$0xff]
  %v457 = vld [vmem:[%s1 + $0x188] sm:$0xff]
  %v458 = vld [vmem:[%s1 + $0x190] sm:$0xff]
  %v459 = vld [vmem:[%s1 + $0x198] sm:$0xff]
  %v460 = vld [vmem:[%s1 + $0x1a0] sm:$0xff]
  %v461 = vld [vmem:[%s1 + $0x1a8] sm:$0xff]
  %v462 = vld [vmem:[%s1 + $0x1b0] sm:$0xff]
  %v463 = vld [vmem:[%s1 + $0x1b8] sm:$0xff]
  %v464 = vld [vmem:[%s1 + $0x1c0] sm:$0xff]
  %v465 = vld [vmem:[%s1 + $0x1c8] sm:$0xff]
  %v466 = vld [vmem:[%s1 + $0x1d0] sm:$0xff]
  %v467 = vld [vmem:[%s1 + $0x1d8] sm:$0xff]
  %v468 = vld [vmem:[%s1 + $0x1e0] sm:$0xff]
  %v469 = vld [vmem:[%s1 + $0x1e8] sm:$0xff]
  %v470 = vld [vmem:[%s1 + $0x1f0] sm:$0xff]
  %v471 = vld [vmem:[%s1 + $0x1f8] sm:$0xff]
  %v472 = vld [vmem:[%s1 + $0x200] sm:$0xff]
  %v473 = vld [vmem:[%s1 + $0x208] sm:$0xff]
  %v474 = vld [vmem:[%s1 + $0x210] sm:$0xff]
  %v475 = vld [vmem:[%s1 + $0x218] sm:$0xff]
  %v476 = vld [vmem:[%s1 + $0x220] sm:$0xff]
  %v477 = vld [vmem:[%s1 + $0x228] sm:$0xff]
  %v478 = vld [vmem:[%s1 + $0x230] sm:$0xff]
  %v479 = vld [vmem:[%s1 + $0x238] sm:$0xff]
  %v480 = vld [vmem:[%s1 + $0x240] sm:$0xff]
  %v481 = vld [vmem:[%s1 + $0x248] sm:$0xff]
  %v482 = vld [vmem:[%s1 + $0x250] sm:$0xff]
  %v483 = vld [vmem:[%s1 + $0x258] sm:$0xff]
  %v484 = vld [vmem:[%s1 + $0x260] sm:$0xff]
  %v485 = vld [vmem:[%s1 + $0x268] sm:$0xff]
  %v486 = vld [vmem:[%s1 + $0x270] sm:$0xff]
  %v487 = vld [vmem:[%s1 + $0x278] sm:$0xff]
  %v568 = vunpack.c.l.b16 %v408
  %v569 = vunpack.c.h.b16 %v408
  %v570 = vunpack.c.l.b16 %v409
  %v571 = vunpack.c.h.b16 %v409
  %v572 = vunpack.c.l.b16 %v410
  %v573 = vunpack.c.h.b16 %v410
  %v574 = vunpack.c.l.b16 %v411
  %v575 = vunpack.c.h.b16 %v411
  %v576 = vunpack.c.l.b16 %v412
  %v577 = vunpack.c.h.b16 %v412
  %v578 = vunpack.c.l.b16 %v413
  %v579 = vunpack.c.h.b16 %v413
  %v580 = vunpack.c.l.b16 %v414
  %v581 = vunpack.c.h.b16 %v414
  %v582 = vunpack.c.l.b16 %v415
  %v583 = vunpack.c.h.b16 %v415
  %v584 = vunpack.c.l.b16 %v416
  %v585 = vunpack.c.h.b16 %v416
  %v586 = vunpack.c.l.b16 %v417
  %v587 = vunpack.c.h.b16 %v417
  %v588 = vunpack.c.l.b16 %v418
  %v589 = vunpack.c.h.b16 %v418
  %v590 = vunpack.c.l.b16 %v419
  %v591 = vunpack.c.h.b16 %v419
  %v592 = vunpack.c.l.b16 %v420
  %v593 = vunpack.c.h.b16 %v420
  %v594 = vunpack.c.l.b16 %v421
  %v595 = vunpack.c.h.b16 %v421
  %v596 = vunpack.c.l.b16 %v422
  %v597 = vunpack.c.h.b16 %v422
  %v598 = vunpack.c.l.b16 %v423
  %v599 = vunpack.c.h.b16 %v423
  %v600 = vunpack.c.l.b16 %v424
  %v601 = vunpack.c.h.b16 %v424
  %v602 = vunpack.c.l.b16 %v425
  %v603 = vunpack.c.h.b16 %v425
  %v604 = vunpack.c.l.b16 %v426
  %v605 = vunpack.c.h.b16 %v426
  %v606 = vunpack.c.l.b16 %v427
  %v607 = vunpack.c.h.b16 %v427
  %v608 = vunpack.c.l.b16 %v428
  %v609 = vunpack.c.h.b16 %v428
  %v610 = vunpack.c.l.b16 %v429
  %v611 = vunpack.c.h.b16 %v429
  %v612 = vunpack.c.l.b16 %v430
  %v613 = vunpack.c.h.b16 %v430
  %v614 = vunpack.c.l.b16 %v431
  %v615 = vunpack.c.h.b16 %v431
  %v616 = vunpack.c.l.b16 %v432
  %v617 = vunpack.c.h.b16 %v432
  %v618 = vunpack.c.l.b16 %v433
  %v619 = vunpack.c.h.b16 %v433
  %v620 = vunpack.c.l.b16 %v434
  %v621 = vunpack.c.h.b16 %v434
  %v622 = vunpack.c.l.b16 %v435
  %v623 = vunpack.c.h.b16 %v435
  %v624 = vunpack.c.l.b16 %v436
  %v625 = vunpack.c.h.b16 %v436
  %v626 = vunpack.c.l.b16 %v437
  %v627 = vunpack.c.h.b16 %v437
  %v628 = vunpack.c.l.b16 %v438
  %v629 = vunpack.c.h.b16 %v438
  %v630 = vunpack.c.l.b16 %v439
  %v631 = vunpack.c.h.b16 %v439
  %v632 = vunpack.c.l.b16 %v440
  %v633 = vunpack.c.h.b16 %v440
  %v634 = vunpack.c.l.b16 %v441
  %v635 = vunpack.c.h.b16 %v441
  %v636 = vunpack.c.l.b16 %v442
  %v637 = vunpack.c.h.b16 %v442
  %v638 = vunpack.c.l.b16 %v443
  %v639 = vunpack.c.h.b16 %v443
  %v640 = vunpack.c.l.b16 %v444
  %v641 = vunpack.c.h.b16 %v444
  %v642 = vunpack.c.l.b16 %v445
  %v643 = vunpack.c.h.b16 %v445
  %v644 = vunpack.c.l.b16 %v446
  %v645 = vunpack.c.h.b16 %v446
  %v646 = vunpack.c.l.b16 %v447
  %v647 = vunpack.c.h.b16 %v447
  %v648 = vunpack.c.l.b16 %v448
  %v649 = vunpack.c.h.b16 %v448
  %v650 = vunpack.c.l.b16 %v449
  %v651 = vunpack.c.h.b16 %v449
  %v652 = vunpack.c.l.b16 %v450
  %v653 = vunpack.c.h.b16 %v450
  %v654 = vunpack.c.l.b16 %v451
  %v655 = vunpack.c.h.b16 %v451
  %v656 = vunpack.c.l.b16 %v452
  %v657 = vunpack.c.h.b16 %v452
  %v658 = vunpack.c.l.b16 %v453
  %v659 = vunpack.c.h.b16 %v453
  %v660 = vunpack.c.l.b16 %v454
  %v661 = vunpack.c.h.b16 %v454
  %v662 = vunpack.c.l.b16 %v455
  %v663 = vunpack.c.h.b16 %v455
  %v664 = vunpack.c.l.b16 %v456
  %v665 = vunpack.c.h.b16 %v456
  %v666 = vunpack.c.l.b16 %v457
  %v667 = vunpack.c.h.b16 %v457
  %v668 = vunpack.c.l.b16 %v458
  %v669 = vunpack.c.h.b16 %v458
  %v670 = vunpack.c.l.b16 %v459
  %v671 = vunpack.c.h.b16 %v459
  %v672 = vunpack.c.l.b16 %v460
  %v673 = vunpack.c.h.b16 %v460
  %v674 = vunpack.c.l.b16 %v461
  %v675 = vunpack.c.h.b16 %v461
  %v676 = vunpack.c.l.b16 %v462
  %v677 = vunpack.c.h.b16 %v462
  %v678 = vunpack.c.l.b16 %v463
  %v679 = vunpack.c.h.b16 %v463
  %v680 = vunpack.c.l.b16 %v464
  %v681 = vunpack.c.h.b16 %v464
  %v682 = vunpack.c.l.b16 %v465
  %v683 = vunpack.c.h.b16 %v465
  %v684 = vunpack.c.l.b16 %v466
  %v685 = vunpack.c.h.b16 %v466
  %v686 = vunpack.c.l.b16 %v467
  %v687 = vunpack.c.h.b16 %v467
  %v688 = vunpack.c.l.b16 %v468
  %v689 = vunpack.c.h.b16 %v468
  %v690 = vunpack.c.l.b16 %v469
  %v691 = vunpack.c.h.b16 %v469
  %v692 = vunpack.c.l.b16 %v470
  %v693 = vunpack.c.h.b16 %v470
  %v694 = vunpack.c.l.b16 %v471
  %v695 = vunpack.c.h.b16 %v471
  %v696 = vunpack.c.l.b16 %v472
  %v697 = vunpack.c.h.b16 %v472
  %v698 = vunpack.c.l.b16 %v473
  %v699 = vunpack.c.h.b16 %v473
  %v700 = vunpack.c.l.b16 %v474
  %v701 = vunpack.c.h.b16 %v474
  %v702 = vunpack.c.l.b16 %v475
  %v703 = vunpack.c.h.b16 %v475
  %v704 = vunpack.c.l.b16 %v476
  %v705 = vunpack.c.h.b16 %v476
  %v706 = vunpack.c.l.b16 %v477
  %v707 = vunpack.c.h.b16 %v477
  %v708 = vunpack.c.l.b16 %v478
  %v709 = vunpack.c.h.b16 %v478
  %v710 = vunpack.c.l.b16 %v479
  %v711 = vunpack.c.h.b16 %v479
  %v712 = vunpack.c.l.b16 %v480
  %v713 = vunpack.c.h.b16 %v480
  %v714 = vunpack.c.l.b16 %v481
  %v715 = vunpack.c.h.b16 %v481
  %v716 = vunpack.c.l.b16 %v482
  %v717 = vunpack.c.h.b16 %v482
  %v718 = vunpack.c.l.b16 %v483
  %v719 = vunpack.c.h.b16 %v483
  %v720 = vunpack.c.l.b16 %v484
  %v721 = vunpack.c.h.b16 %v484
  %v722 = vunpack.c.l.b16 %v485
  %v723 = vunpack.c.h.b16 %v485
  %v724 = vunpack.c.l.b16 %v486
  %v725 = vunpack.c.h.b16 %v486
  %v726 = vunpack.c.l.b16 %v487
  %v727 = vunpack.c.h.b16 %v487
  %v728 = vpack.c.b16 %v578, %v568
  %v729 = vpack.c.b16 %v579, %v569
  %v730 = vpack.c.b16 %v580, %v570
  %v731 = vpack.c.b16 %v581, %v571
  %v732 = vpack.c.b16 %v582, %v572
  %v733 = vpack.c.b16 %v583, %v573
  %v734 = vpack.c.b16 %v584, %v574
  %v735 = vpack.c.b16 %v585, %v575
  %v736 = vpack.c.b16 %v586, %v576
  %v737 = vpack.c.b16 %v587, %v577
  %v738 = vpack.c.b16 %v598, %v588
  %v739 = vpack.c.b16 %v599, %v589
  %v740 = vpack.c.b16 %v600, %v590
  %v741 = vpack.c.b16 %v601, %v591
  %v742 = vpack.c.b16 %v602, %v592
  %v743 = vpack.c.b16 %v603, %v593
  %v744 = vpack.c.b16 %v604, %v594
  %v745 = vpack.c.b16 %v605, %v595
  %v746 = vpack.c.b16 %v606, %v596
  %v747 = vpack.c.b16 %v607, %v597
  %v748 = vpack.c.b16 %v618, %v608
  %v749 = vpack.c.b16 %v619, %v609
  %v750 = vpack.c.b16 %v620, %v610
  %v751 = vpack.c.b16 %v621, %v611
  %v752 = vpack.c.b16 %v622, %v612
  %v753 = vpack.c.b16 %v623, %v613
  %v754 = vpack.c.b16 %v624, %v614
  %v755 = vpack.c.b16 %v625, %v615
  %v756 = vpack.c.b16 %v626, %v616
  %v757 = vpack.c.b16 %v627, %v617
  %v758 = vpack.c.b16 %v638, %v628
  %v759 = vpack.c.b16 %v639, %v629
  %v760 = vpack.c.b16 %v640, %v630
  %v761 = vpack.c.b16 %v641, %v631
  %v762 = vpack.c.b16 %v642, %v632
  %v763 = vpack.c.b16 %v643, %v633
  %v764 = vpack.c.b16 %v644, %v634
  %v765 = vpack.c.b16 %v645, %v635
  %v766 = vpack.c.b16 %v646, %v636
  %v767 = vpack.c.b16 %v647, %v637
  %v768 = vpack.c.b16 %v658, %v648
  %v769 = vpack.c.b16 %v659, %v649
  %v770 = vpack.c.b16 %v660, %v650
  %v771 = vpack.c.b16 %v661, %v651
  %v772 = vpack.c.b16 %v662, %v652
  %v773 = vpack.c.b16 %v663, %v653
  %v774 = vpack.c.b16 %v664, %v654
  %v775 = vpack.c.b16 %v665, %v655
  %v776 = vpack.c.b16 %v666, %v656
  %v777 = vpack.c.b16 %v667, %v657
  %v778 = vpack.c.b16 %v678, %v668
  %v779 = vpack.c.b16 %v679, %v669
  %v780 = vpack.c.b16 %v680, %v670
  %v781 = vpack.c.b16 %v681, %v671
  %v782 = vpack.c.b16 %v682, %v672
  %v783 = vpack.c.b16 %v683, %v673
  %v784 = vpack.c.b16 %v684, %v674
  %v785 = vpack.c.b16 %v685, %v675
  %v786 = vpack.c.b16 %v686, %v676
  %v787 = vpack.c.b16 %v687, %v677
  %v788 = vpack.c.b16 %v698, %v688
  %v789 = vpack.c.b16 %v699, %v689
  %v790 = vpack.c.b16 %v700, %v690
  %v791 = vpack.c.b16 %v701, %v691
  %v792 = vpack.c.b16 %v702, %v692
  %v793 = vpack.c.b16 %v703, %v693
  %v794 = vpack.c.b16 %v704, %v694
  %v795 = vpack.c.b16 %v705, %v695
  %v796 = vpack.c.b16 %v706, %v696
  %v797 = vpack.c.b16 %v707, %v697
  %v798 = vpack.c.b16 %v718, %v708
  %v799 = vpack.c.b16 %v719, %v709
  %v800 = vpack.c.b16 %v720, %v710
  %v801 = vpack.c.b16 %v721, %v711
  %v802 = vpack.c.b16 %v722, %v712
  %v803 = vpack.c.b16 %v723, %v713
  %v804 = vpack.c.b16 %v724, %v714
  %v805 = vpack.c.b16 %v725, %v715
  %v806 = vpack.c.b16 %v726, %v716
  %v807 = vpack.c.b16 %v727, %v717
  %vm880 = vcmask 785408
  %v882 = vsel %vm880, %v737, 0
  %v885 = vsel %vm880, %v747, 0
  %v888 = vsel %vm880, %v757, 0
  %v891 = vsel %vm880, %v767, 0
  %v894 = vsel %vm880, %v777, 0
  %v897 = vsel %vm880, %v787, 0
  %v900 = vsel %vm880, %v797, 0
  %v903 = vsel %vm880, %v807, 0
  %905 = vmatprep.subr.bf16.mxu0 0
  %906 = vmatpush1.bf16.msra.mxu0 %v330
  %907 = vmatprep.subr.bf16.mxu0 0
  %908 = vmatpush1.bf16.msra.mxu0 %v331
  %909 = vmatprep.subr.bf16.mxu0 0
  %910 = vmatpush1.bf16.msra.mxu0 %v332
  %911 = vmatprep.subr.bf16.mxu0 0
  %912 = vmatpush1.bf16.msra.mxu0 %v333
  %913 = vmatprep.subr.bf16.mxu0 0
  %914 = vmatpush1.bf16.msra.mxu0 %v334
  %915 = vmatprep.subr.bf16.mxu0 0
  %916 = vmatpush1.bf16.msra.mxu0 %v335
  %917 = vmatprep.subr.bf16.mxu0 0
  %918 = vmatpush1.bf16.msra.mxu0 %v336
  %919 = vmatprep.subr.bf16.mxu0 0
  %920 = vmatpush1.bf16.msra.mxu0 %v337
  %921 = vmatprep.subr.bf16.mxu0 0
  %922 = vmatpush1.bf16.msra.mxu0 %v338
  %923 = vmatprep.subr.bf16.mxu0 0
  %924 = vmatpush1.bf16.msra.mxu0 %v339
  %925 = vmatprep.subr.bf16.mxu0 0
  %926 = vmatpush1.bf16.msra.mxu0 %v340
  %927 = vmatprep.subr.bf16.mxu0 0
  %928 = vmatpush1.bf16.msra.mxu0 %v341
  %929 = vmatprep.subr.bf16.mxu0 0
  %930 = vmatpush1.bf16.msra.mxu0 %v342
  %931 = vmatprep.subr.bf16.mxu0 0
  %932 = vmatpush1.bf16.msra.mxu0 %v343
  %933 = vmatprep.subr.bf16.mxu0 0
  %934 = vmatpush1.bf16.msra.mxu0 %v344
  %935 = vmatprep.subr.bf16.mxu0 0
  %936 = vmatpush1.bf16.msra.mxu0 %v345
  %937 = vmatprep.mubr.bf16.mxu0 %v729
  %938 = vmatmul.mubr.bf16.gmra.mrb[0].mxu0 %v728
  %v939 = vpop.f32.mrb[0].mxu0
  %v940 = vadd.f32 0.0, %v939
  %v941 = vpop.f32.mrb[0].mxu0
  %v942 = vpop.f32.mrb[0].mxu0
  %v943 = vadd.f32 0.0, %v942
  %v944 = vpop.f32.mrb[0].mxu0
  %945 = vmatprep.mubr.bf16.mxu0 %v739
  %946 = vmatmul.mubr.bf16.gmra.mrb[0].mxu0 %v738
  %v947 = vpop.f32.mrb[0].mxu0
  %v948 = vadd.f32 0.0, %v947
  %v949 = vpop.f32.mrb[0].mxu0
  %v950 = vpop.f32.mrb[0].mxu0
  %v951 = vadd.f32 0.0, %v950
  %v952 = vpop.f32.mrb[0].mxu0
  %953 = vmatprep.mubr.bf16.mxu0 %v749
  %954 = vmatmul.mubr.bf16.gmra.mrb[0].mxu0 %v748
  %v955 = vpop.f32.mrb[0].mxu0
  %v956 = vadd.f32 0.0, %v955
  %v957 = vpop.f32.mrb[0].mxu0
  %v958 = vpop.f32.mrb[0].mxu0
  %v959 = vadd.f32 0.0, %v958
  %v960 = vpop.f32.mrb[0].mxu0
  %961 = vmatprep.mubr.bf16.mxu0 %v759
  %962 = vmatmul.mubr.bf16.gmra.mrb[0].mxu0 %v758
  %v963 = vpop.f32.mrb[0].mxu0
  %v964 = vadd.f32 0.0, %v963
  %v965 = vpop.f32.mrb[0].mxu0
  %v966 = vpop.f32.mrb[0].mxu0
  %v967 = vadd.f32 0.0, %v966
  %v968 = vpop.f32.mrb[0].mxu0
  %969 = vmatprep.mubr.bf16.mxu0 %v769
  %970 = vmatmul.mubr.bf16.gmra.mrb[0].mxu0 %v768
  %v971 = vpop.f32.mrb[0].mxu0
  %v972 = vadd.f32 0.0, %v971
  %v973 = vpop.f32.mrb[0].mxu0
  %v974 = vpop.f32.mrb[0].mxu0
  %v975 = vadd.f32 0.0, %v974
  %v976 = vpop.f32.mrb[0].mxu0
  %977 = vmatprep.mubr.bf16.mxu0 %v779
  %978 = vmatmul.mubr.bf16.gmra.mrb[0].mxu0 %v778
  %v979 = vpop.f32.mrb[0].mxu0
  %v980 = vadd.f32 0.0, %v979
  %v981 = vpop.f32.mrb[0].mxu0
  %v982 = vpop.f32.mrb[0].mxu0
  %v983 = vadd.f32 0.0, %v982
  %v984 = vpop.f32.mrb[0].mxu0
  %985 = vmatprep.mubr.bf16.mxu0 %v789
  %986 = vmatmul.mubr.bf16.gmra.mrb[0].mxu0 %v788
  %v987 = vpop.f32.mrb[0].mxu0
  %v988 = vadd.f32 0.0, %v987
  %v989 = vpop.f32.mrb[0].mxu0
  %v990 = vpop.f32.mrb[0].mxu0
  %v991 = vadd.f32 0.0, %v990
  %v992 = vpop.f32.mrb[0].mxu0
  %993 = vmatprep.mubr.bf16.mxu0 %v799
  %994 = vmatmul.mubr.bf16.gmra.mrb[0].mxu0 %v798
  %v995 = vpop.f32.mrb[0].mxu0
  %v996 = vadd.f32 0.0, %v995
  %v997 = vpop.f32.mrb[0].mxu0
  %v998 = vpop.f32.mrb[0].mxu0
  %v999 = vadd.f32 0.0, %v998
  %v1000 = vpop.f32.mrb[0].mxu0
  %1001 = vdwg.mxu0
  %1002 = vmatprep.subr.bf16.mxu0 0
  %1003 = vmatpush1.bf16.msra.mxu0 %v346
  %1004 = vmatprep.subr.bf16.mxu0 0
  %1005 = vmatpush1.bf16.msra.mxu0 %v347
  %1006 = vmatprep.subr.bf16.mxu0 0
  %1007 = vmatpush1.bf16.msra.mxu0 %v348
  %1008 = vmatprep.subr.bf16.mxu0 0
  %1009 = vmatpush1.bf16.msra.mxu0 %v349
  %1010 = vmatprep.subr.bf16.mxu0 0
  %1011 = vmatpush1.bf16.msra.mxu0 %v350
  %1012 = vmatprep.subr.bf16.mxu0 0
  %1013 = vmatpush1.bf16.msra.mxu0 %v351
  %1014 = vmatprep.subr.bf16.mxu0 0
  %1015 = vmatpush1.bf16.msra.mxu0 %v352
  %1016 = vmatprep.subr.bf16.mxu0 0
  %1017 = vmatpush1.bf16.msra.mxu0 %v353
  %1018 = vmatprep.subr.bf16.mxu0 0
  %1019 = vmatpush1.bf16.msra.mxu0 %v354
  %1020 = vmatprep.subr.bf16.mxu0 0
  %1021 = vmatpush1.bf16.msra.mxu0 %v355
  %1022 = vmatprep.subr.bf16.mxu0 0
  %1023 = vmatpush1.bf16.msra.mxu0 %v356
  %1024 = vmatprep.subr.bf16.mxu0 0
  %1025 = vmatpush1.bf16.msra.mxu0 %v357
  %1026 = vmatprep.subr.bf16.mxu0 0
  %1027 = vmatpush1.bf16.msra.mxu0 %v358
  %1028 = vmatprep.subr.bf16.mxu0 0
  %1029 = vmatpush1.bf16.msra.mxu0 %v359
  %1030 = vmatprep.subr.bf16.mxu0 0
  %1031 = vmatpush1.bf16.msra.mxu0 %v360
  %1032 = vmatprep.subr.bf16.mxu0 0
  %1033 = vmatpush1.bf16.msra.mxu0 %v361
  %1034 = vmatprep.mubr.bf16.mxu0 %v731
  %1035 = vmatmul.mubr.bf16.gmra.mrb[0].mxu0 %v730
  %v1036 = vpop.f32.mrb[0].mxu0
  %v1037 = vadd.f32 %v940, %v1036
  %v1038 = vpop.f32.mrb[0].mxu0
  %v1039 = vpop.f32.mrb[0].mxu0
  %v1040 = vadd.f32 %v943, %v1039
  %v1041 = vpop.f32.mrb[0].mxu0
  %1042 = vmatprep.mubr.bf16.mxu0 %v741
  %1043 = vmatmul.mubr.bf16.gmra.mrb[0].mxu0 %v740
  %v1044 = vpop.f32.mrb[0].mxu0
  %v1045 = vadd.f32 %v948, %v1044
  %v1046 = vpop.f32.mrb[0].mxu0
  %v1047 = vpop.f32.mrb[0].mxu0
  %v1048 = vadd.f32 %v951, %v1047
  %v1049 = vpop.f32.mrb[0].mxu0
  %1050 = vmatprep.mubr.bf16.mxu0 %v751
  %1051 = vmatmul.mubr.bf16.gmra.mrb[0].mxu0 %v750
  %v1052 = vpop.f32.mrb[0].mxu0
  %v1053 = vadd.f32 %v956, %v1052
  %v1054 = vpop.f32.mrb[0].mxu0
  %v1055 = vpop.f32.mrb[0].mxu0
  %v1056 = vadd.f32 %v959, %v1055
  %v1057 = vpop.f32.mrb[0].mxu0
  %1058 = vmatprep.mubr.bf16.mxu0 %v761
  %1059 = vmatmul.mubr.bf16.gmra.mrb[0].mxu0 %v760
  %v1060 = vpop.f32.mrb[0].mxu0
  %v1061 = vadd.f32 %v964, %v1060
  %v1062 = vpop.f32.mrb[0].mxu0
  %v1063 = vpop.f32.mrb[0].mxu0
  %v1064 = vadd.f32 %v967, %v1063
  %v1065 = vpop.f32.mrb[0].mxu0
  %1066 = vmatprep.mubr.bf16.mxu0 %v771
  %1067 = vmatmul.mubr.bf16.gmra.mrb[0].mxu0 %v770
  %v1068 = vpop.f32.mrb[0].mxu0
  %v1069 = vadd.f32 %v972, %v1068
  %v1070 = vpop.f32.mrb[0].mxu0
  %v1071 = vpop.f32.mrb[0].mxu0
  %v1072 = vadd.f32 %v975, %v1071
  %v1073 = vpop.f32.mrb[0].mxu0
  %1074 = vmatprep.mubr.bf16.mxu0 %v781
  %1075 = vmatmul.mubr.bf16.gmra.mrb[0].mxu0 %v780
  %v1076 = vpop.f32.mrb[0].mxu0
  %v1077 = vadd.f32 %v980, %v1076
  %v1078 = vpop.f32.mrb[0].mxu0
  %v1079 = vpop.f32.mrb[0].mxu0
  %v1080 = vadd.f32 %v983, %v1079
  %v1081 = vpop.f32.mrb[0].mxu0
  %1082 = vmatprep.mubr.bf16.mxu0 %v791
  %1083 = vmatmul.mubr.bf16.gmra.mrb[0].mxu0 %v790
  %v1084 = vpop.f32.mrb[0].mxu0
  %v1085 = vadd.f32 %v988, %v1084
  %v1086 = vpop.f32.mrb[0].mxu0
  %v1087 = vpop.f32.mrb[0].mxu0
  %v1088 = vadd.f32 %v991, %v1087
  %v1089 = vpop.f32.mrb[0].mxu0
  %1090 = vmatprep.mubr.bf16.mxu0 %v801
  %1091 = vmatmul.mubr.bf16.gmra.mrb[0].mxu0 %v800
  %v1092 = vpop.f32.mrb[0].mxu0
  %v1093 = vadd.f32 %v996, %v1092
  %v1094 = vpop.f32.mrb[0].mxu0
  %v1095 = vpop.f32.mrb[0].mxu0
  %v1096 = vadd.f32 %v999, %v1095
  %v1097 = vpop.f32.mrb[0].mxu0
  %1098 = vdwg.mxu0
  %1099 = vmatprep.subr.bf16.mxu0 0
  %1100 = vmatpush1.bf16.msra.mxu0 %v362
  %1101 = vmatprep.subr.bf16.mxu0 0
  %1102 = vmatpush1.bf16.msra.mxu0 %v363
  %1103 = vmatprep.subr.bf16.mxu0 0
  %1104 = vmatpush1.bf16.msra.mxu0 %v364
  %1105 = vmatprep.subr.bf16.mxu0 0
  %1106 = vmatpush1.bf16.msra.mxu0 %v365
  %1107 = vmatprep.subr.bf16.mxu0 0
  %1108 = vmatpush1.bf16.msra.mxu0 %v366
  %1109 = vmatprep.subr.bf16.mxu0 0
  %1110 = vmatpush1.bf16.msra.mxu0 %v367
  %1111 = vmatprep.subr.bf16.mxu0 0
  %1112 = vmatpush1.bf16.msra.mxu0 %v368
  %1113 = vmatprep.subr.bf16.mxu0 0
  %1114 = vmatpush1.bf16.msra.mxu0 %v369
  %1115 = vmatprep.subr.bf16.mxu0 0
  %1116 = vmatpush1.bf16.msra.mxu0 %v370
  %1117 = vmatprep.subr.bf16.mxu0 0
  %1118 = vmatpush1.bf16.msra.mxu0 %v371
  %1119 = vmatprep.subr.bf16.mxu0 0
  %1120 = vmatpush1.bf16.msra.mxu0 %v372
  %1121 = vmatprep.subr.bf16.mxu0 0
  %1122 = vmatpush1.bf16.msra.mxu0 %v373
  %1123 = vmatprep.subr.bf16.mxu0 0
  %1124 = vmatpush1.bf16.msra.mxu0 %v374
  %1125 = vmatprep.subr.bf16.mxu0 0
  %1126 = vmatpush1.bf16.msra.mxu0 %v375
  %1127 = vmatprep.subr.bf16.mxu0 0
  %1128 = vmatpush1.bf16.msra.mxu0 %v376
  %1129 = vmatprep.subr.bf16.mxu0 0
  %1130 = vmatpush1.bf16.msra.mxu0 %v377
  %1131 = vmatprep.mubr.bf16.mxu0 %v733
  %1132 = vmatmul.mubr.bf16.gmra.mrb[0].mxu0 %v732
  %v1133 = vpop.f32.mrb[0].mxu0
  %v1134 = vadd.f32 %v1037, %v1133
  %v1135 = vpop.f32.mrb[0].mxu0
  %v1136 = vpop.f32.mrb[0].mxu0
  %v1137 = vadd.f32 %v1040, %v1136
  %v1138 = vpop.f32.mrb[0].mxu0
  %1139 = vmatprep.mubr.bf16.mxu0 %v743
  %1140 = vmatmul.mubr.bf16.gmra.mrb[0].mxu0 %v742
  %v1141 = vpop.f32.mrb[0].mxu0
  %v1142 = vadd.f32 %v1045, %v1141
  %v1143 = vpop.f32.mrb[0].mxu0
  %v1144 = vpop.f32.mrb[0].mxu0
  %v1145 = vadd.f32 %v1048, %v1144
  %v1146 = vpop.f32.mrb[0].mxu0
  %1147 = vmatprep.mubr.bf16.mxu0 %v753
  %1148 = vmatmul.mubr.bf16.gmra.mrb[0].mxu0 %v752
  %v1149 = vpop.f32.mrb[0].mxu0
  %v1150 = vadd.f32 %v1053, %v1149
  %v1151 = vpop.f32.mrb[0].mxu0
  %v1152 = vpop.f32.mrb[0].mxu0
  %v1153 = vadd.f32 %v1056, %v1152
  %v1154 = vpop.f32.mrb[0].mxu0
  %1155 = vmatprep.mubr.bf16.mxu0 %v763
  %1156 = vmatmul.mubr.bf16.gmra.mrb[0].mxu0 %v762
  %v1157 = vpop.f32.mrb[0].mxu0
  %v1158 = vadd.f32 %v1061, %v1157
  %v1159 = vpop.f32.mrb[0].mxu0
  %v1160 = vpop.f32.mrb[0].mxu0
  %v1161 = vadd.f32 %v1064, %v1160
  %v1162 = vpop.f32.mrb[0].mxu0
  %1163 = vmatprep.mubr.bf16.mxu0 %v773
  %1164 = vmatmul.mubr.bf16.gmra.mrb[0].mxu0 %v772
  %v1165 = vpop.f32.mrb[0].mxu0
  %v1166 = vadd.f32 %v1069, %v1165
  %v1167 = vpop.f32.mrb[0].mxu0
  %v1168 = vpop.f32.mrb[0].mxu0
  %v1169 = vadd.f32 %v1072, %v1168
  %v1170 = vpop.f32.mrb[0].mxu0
  %1171 = vmatprep.mubr.bf16.mxu0 %v783
  %1172 = vmatmul.mubr.bf16.gmra.mrb[0].mxu0 %v782
  %v1173 = vpop.f32.mrb[0].mxu0
  %v1174 = vadd.f32 %v1077, %v1173
  %v1175 = vpop.f32.mrb[0].mxu0
  %v1176 = vpop.f32.mrb[0].mxu0
  %v1177 = vadd.f32 %v1080, %v1176
  %v1178 = vpop.f32.mrb[0].mxu0
  %1179 = vmatprep.mubr.bf16.mxu0 %v793
  %1180 = vmatmul.mubr.bf16.gmra.mrb[0].mxu0 %v792
  %v1181 = vpop.f32.mrb[0].mxu0
  %v1182 = vadd.f32 %v1085, %v1181
  %v1183 = vpop.f32.mrb[0].mxu0
  %v1184 = vpop.f32.mrb[0].mxu0
  %v1185 = vadd.f32 %v1088, %v1184
  %v1186 = vpop.f32.mrb[0].mxu0
  %1187 = vmatprep.mubr.bf16.mxu0 %v803
  %1188 = vmatmul.mubr.bf16.gmra.mrb[0].mxu0 %v802
  %v1189 = vpop.f32.mrb[0].mxu0
  %v1190 = vadd.f32 %v1093, %v1189
  %v1191 = vpop.f32.mrb[0].mxu0
  %v1192 = vpop.f32.mrb[0].mxu0
  %v1193 = vadd.f32 %v1096, %v1192
  %v1194 = vpop.f32.mrb[0].mxu0
  %1195 = vdwg.mxu0
  %1196 = vmatprep.subr.bf16.mxu0 0
  %1197 = vmatpush1.bf16.msra.mxu0 %v378
  %1198 = vmatprep.subr.bf16.mxu0 0
  %1199 = vmatpush1.bf16.msra.mxu0 %v379
  %1200 = vmatprep.subr.bf16.mxu0 0
  %1201 = vmatpush1.bf16.msra.mxu0 %v380
  %1202 = vmatprep.subr.bf16.mxu0 0
  %1203 = vmatpush1.bf16.msra.mxu0 %v381
  %1204 = vmatprep.subr.bf16.mxu0 0
  %1205 = vmatpush1.bf16.msra.mxu0 %v382
  %1206 = vmatprep.subr.bf16.mxu0 0
  %1207 = vmatpush1.bf16.msra.mxu0 %v383
  %1208 = vmatprep.subr.bf16.mxu0 0
  %1209 = vmatpush1.bf16.msra.mxu0 %v384
  %1210 = vmatprep.subr.bf16.mxu0 0
  %1211 = vmatpush1.bf16.msra.mxu0 %v385
  %1212 = vmatprep.subr.bf16.mxu0 0
  %1213 = vmatpush1.bf16.msra.mxu0 %v386
  %1214 = vmatprep.subr.bf16.mxu0 0
  %1215 = vmatpush1.bf16.msra.mxu0 %v387
  %1216 = vmatprep.subr.bf16.mxu0 0
  %1217 = vmatpush1.bf16.msra.mxu0 %v388
  %1218 = vmatprep.subr.bf16.mxu0 0
  %1219 = vmatpush1.bf16.msra.mxu0 %v389
  %1220 = vmatprep.subr.bf16.mxu0 0
  %1221 = vmatpush1.bf16.msra.mxu0 %v390
  %1222 = vmatprep.subr.bf16.mxu0 0
  %1223 = vmatpush1.bf16.msra.mxu0 %v391
  %1224 = vmatprep.subr.bf16.mxu0 0
  %1225 = vmatpush1.bf16.msra.mxu0 %v392
  %1226 = vmatprep.subr.bf16.mxu0 0
  %1227 = vmatpush1.bf16.msra.mxu0 %v393
  %1228 = vmatprep.mubr.bf16.mxu0 %v735
  %1229 = vmatmul.mubr.bf16.gmra.mrb[0].mxu0 %v734
  %v1230 = vpop.f32.mrb[0].mxu0
  %v1231 = vadd.f32 %v1134, %v1230
  %v1232 = vpop.f32.mrb[0].mxu0
  %v1233 = vpop.f32.mrb[0].mxu0
  %v1234 = vadd.f32 %v1137, %v1233
  %v1235 = vpop.f32.mrb[0].mxu0
  %1236 = vmatprep.mubr.bf16.mxu0 %v745
  %1237 = vmatmul.mubr.bf16.gmra.mrb[0].mxu0 %v744
  %v1238 = vpop.f32.mrb[0].mxu0
  %v1239 = vadd.f32 %v1142, %v1238
  %v1240 = vpop.f32.mrb[0].mxu0
  %v1241 = vpop.f32.mrb[0].mxu0
  %v1242 = vadd.f32 %v1145, %v1241
  %v1243 = vpop.f32.mrb[0].mxu0
  %1244 = vmatprep.mubr.bf16.mxu0 %v755
  %1245 = vmatmul.mubr.bf16.gmra.mrb[0].mxu0 %v754
  %v1246 = vpop.f32.mrb[0].mxu0
  %v1247 = vadd.f32 %v1150, %v1246
  %v1248 = vpop.f32.mrb[0].mxu0
  %v1249 = vpop.f32.mrb[0].mxu0
  %v1250 = vadd.f32 %v1153, %v1249
  %v1251 = vpop.f32.mrb[0].mxu0
  %1252 = vmatprep.mubr.bf16.mxu0 %v765
  %1253 = vmatmul.mubr.bf16.gmra.mrb[0].mxu0 %v764
  %v1254 = vpop.f32.mrb[0].mxu0
  %v1255 = vadd.f32 %v1158, %v1254
  %v1256 = vpop.f32.mrb[0].mxu0
  %v1257 = vpop.f32.mrb[0].mxu0
  %v1258 = vadd.f32 %v1161, %v1257
  %v1259 = vpop.f32.mrb[0].mxu0
  %1260 = vmatprep.mubr.bf16.mxu0 %v775
  %1261 = vmatmul.mubr.bf16.gmra.mrb[0].mxu0 %v774
  %v1262 = vpop.f32.mrb[0].mxu0
  %v1263 = vadd.f32 %v1166, %v1262
  %v1264 = vpop.f32.mrb[0].mxu0
  %v1265 = vpop.f32.mrb[0].mxu0
  %v1266 = vadd.f32 %v1169, %v1265
  %v1267 = vpop.f32.mrb[0].mxu0
  %1268 = vmatprep.mubr.bf16.mxu0 %v785
  %1269 = vmatmul.mubr.bf16.gmra.mrb[0].mxu0 %v784
  %v1270 = vpop.f32.mrb[0].mxu0
  %v1271 = vadd.f32 %v1174, %v1270
  %v1272 = vpop.f32.mrb[0].mxu0
  %v1273 = vpop.f32.mrb[0].mxu0
  %v1274 = vadd.f32 %v1177, %v1273
  %v1275 = vpop.f32.mrb[0].mxu0
  %1276 = vmatprep.mubr.bf16.mxu0 %v795
  %1277 = vmatmul.mubr.bf16.gmra.mrb[0].mxu0 %v794
  %v1278 = vpop.f32.mrb[0].mxu0
  %v1279 = vadd.f32 %v1182, %v1278
  %v1280 = vpop.f32.mrb[0].mxu0
  %v1281 = vpop.f32.mrb[0].mxu0
  %v1282 = vadd.f32 %v1185, %v1281
  %v1283 = vpop.f32.mrb[0].mxu0
  %1284 = vmatprep.mubr.bf16.mxu0 %v805
  %1285 = vmatmul.mubr.bf16.gmra.mrb[0].mxu0 %v804
  %v1286 = vpop.f32.mrb[0].mxu0
  %v1287 = vadd.f32 %v1190, %v1286
  %v1288 = vpop.f32.mrb[0].mxu0
  %v1289 = vpop.f32.mrb[0].mxu0
  %v1290 = vadd.f32 %v1193, %v1289
  %v1291 = vpop.f32.mrb[0].mxu0
  %1292 = vdwg.mxu0
  %1293 = vmatprep.subr.bf16.mxu0 0
  %1294 = vmatpush1.bf16.msra.mxu0 %v394
  %1295 = vmatprep.subr.bf16.mxu0 0
  %1296 = vmatpush1.bf16.msra.mxu0 %v395
  %1297 = vmatprep.subr.bf16.mxu0 0
  %1298 = vmatpush1.bf16.msra.mxu0 %v396
  %1299 = vmatprep.subr.bf16.mxu0 0
  %1300 = vmatpush1.bf16.msra.mxu0 %v397
  %1301 = vmatprep.subr.bf16.mxu0 0
  %1302 = vmatpush1.bf16.msra.mxu0 %v398
  %1303 = vmatprep.subr.bf16.mxu0 0
  %1304 = vmatpush1.bf16.msra.mxu0 %v399
  %1305 = vmatprep.subr.bf16.mxu0 0
  %1306 = vmatpush1.bf16.msra.mxu0 %v400
  %1307 = vmatprep.subr.bf16.mxu0 0
  %1308 = vmatpush1.bf16.msra.mxu0 %v401
  %1309 = vmatprep.subr.bf16.mxu0 0
  %1310 = vmatpush1.bf16.msra.mxu0 %v402
  %1311 = vmatprep.subr.bf16.mxu0 0
  %1312 = vmatpush1.bf16.msra.mxu0 %v403
  %1313 = vmatprep.subr.bf16.mxu0 0
  %1314 = vmatpush1.bf16.msra.mxu0 %v404
  %1315 = vmatprep.subr.bf16.mxu0 0
  %1316 = vmatpush1.bf16.msra.mxu0 %v405
  %1317 = vmatprep.subr.bf16.mxu0 0
  %1318 = vmatpush1.bf16.msra.mxu0 %v406
  %1319 = vmatprep.subr.bf16.mxu0 0
  %1320 = vmatpush1.bf16.msra.mxu0 %v407
  %1321 = vmatprep.subr.bf16.mxu0 0
  %1322 = vmatpush1.bf16.msra.mxu0 0
  %1323 = vmatprep.subr.bf16.mxu0 0
  %1324 = vmatpush1.bf16.msra.mxu0 0
  %1325 = vmatprep.mubr.bf16.mxu0 %v882
  %1326 = vmatmul.mubr.bf16.gmra.mrb[0].mxu0 %v736
  %v1327 = vpop.f32.mrb[0].mxu0
  %v1328 = vadd.f32 %v1231, %v1327
  %v1329 = vpop.f32.mrb[0].mxu0
  %v1330 = vpop.f32.mrb[0].mxu0
  %v1331 = vadd.f32 %v1234, %v1330
  %v1332 = vpop.f32.mrb[0].mxu0
  %1333 = vmatprep.mubr.bf16.mxu0 %v885
  %1334 = vmatmul.mubr.bf16.gmra.mrb[0].mxu0 %v746
  %v1335 = vpop.f32.mrb[0].mxu0
  %v1336 = vadd.f32 %v1239, %v1335
  %v1337 = vpop.f32.mrb[0].mxu0
  %v1338 = vpop.f32.mrb[0].mxu0
  %v1339 = vadd.f32 %v1242, %v1338
  %v1340 = vpop.f32.mrb[0].mxu0
  %1341 = vmatprep.mubr.bf16.mxu0 %v888
  %1342 = vmatmul.mubr.bf16.gmra.mrb[0].mxu0 %v756
  %v1343 = vpop.f32.mrb[0].mxu0
  %v1344 = vadd.f32 %v1247, %v1343
  %v1345 = vpop.f32.mrb[0].mxu0
  %v1346 = vpop.f32.mrb[0].mxu0
  %v1347 = vadd.f32 %v1250, %v1346
  %v1348 = vpop.f32.mrb[0].mxu0
  %1349 = vmatprep.mubr.bf16.mxu0 %v891
  %1350 = vmatmul.mubr.bf16.gmra.mrb[0].mxu0 %v766
  %v1351 = vpop.f32.mrb[0].mxu0
  %v1352 = vadd.f32 %v1255, %v1351
  %v1353 = vpop.f32.mrb[0].mxu0
  %v1354 = vpop.f32.mrb[0].mxu0
  %v1355 = vadd.f32 %v1258, %v1354
  %v1356 = vpop.f32.mrb[0].mxu0
  %1357 = vmatprep.mubr.bf16.mxu0 %v894
  %1358 = vmatmul.mubr.bf16.gmra.mrb[0].mxu0 %v776
  %v1359 = vpop.f32.mrb[0].mxu0
  %v1360 = vadd.f32 %v1263, %v1359
  %v1361 = vpop.f32.mrb[0].mxu0
  %v1362 = vpop.f32.mrb[0].mxu0
  %v1363 = vadd.f32 %v1266, %v1362
  %v1364 = vpop.f32.mrb[0].mxu0
  %1365 = vmatprep.mubr.bf16.mxu0 %v897
  %1366 = vmatmul.mubr.bf16.gmra.mrb[0].mxu0 %v786
  %v1367 = vpop.f32.mrb[0].mxu0
  %v1368 = vadd.f32 %v1271, %v1367
  %v1369 = vpop.f32.mrb[0].mxu0
  %v1370 = vpop.f32.mrb[0].mxu0
  %v1371 = vadd.f32 %v1274, %v1370
  %v1372 = vpop.f32.mrb[0].mxu0
  %1373 = vmatprep.mubr.bf16.mxu0 %v900
  %1374 = vmatmul.mubr.bf16.gmra.mrb[0].mxu0 %v796
  %v1375 = vpop.f32.mrb[0].mxu0
  %v1376 = vadd.f32 %v1279, %v1375
  %v1377 = vpop.f32.mrb[0].mxu0
  %v1378 = vpop.f32.mrb[0].mxu0
  %v1379 = vadd.f32 %v1282, %v1378
  %v1380 = vpop.f32.mrb[0].mxu0
  %1381 = vmatprep.mubr.bf16.mxu0 %v903
  %1382 = vmatmul.mubr.bf16.gmra.mrb[0].mxu0 %v806
  %v1383 = vpop.f32.mrb[0].mxu0
  %v1384 = vadd.f32 %v1287, %v1383
  %v1385 = vpop.f32.mrb[0].mxu0
  %v1386 = vpop.f32.mrb[0].mxu0
  %v1387 = vadd.f32 %v1290, %v1386
  %v1388 = vpop.f32.mrb[0].mxu0
  %1389 = vdwg.mxu0
  %vm1390 = vcmask 400384
  %v1391 = vsel %vm1390, %v1328, 0.0
  %1392 = vadd.xlane.f32.xlu0 %v1391
  %v1393 = vpop.xlane.xlu0 %1392
  %v1394 = vsel %vm1390, %v1331, 0.0
  %1395 = vadd.xlane.f32.xlu0 %v1394
  %v1396 = vpop.xlane.xlu0 %1395
  %v1397 = vsel %vm1390, %v1336, 0.0
  %1398 = vadd.xlane.f32.xlu0 %v1397
  %v1399 = vpop.xlane.xlu0 %1398
  %v1400 = vsel %vm1390, %v1339, 0.0
  %1401 = vadd.xlane.f32.xlu0 %v1400
  %v1402 = vpop.xlane.xlu0 %1401
  %v1403 = vsel %vm1390, %v1344, 0.0
  %1404 = vadd.xlane.f32.xlu0 %v1403
  %v1405 = vpop.xlane.xlu0 %1404
  %v1406 = vsel %vm1390, %v1347, 0.0
  %1407 = vadd.xlane.f32.xlu0 %v1406
  %v1408 = vpop.xlane.xlu0 %1407
  %v1409 = vsel %vm1390, %v1352, 0.0
  %1410 = vadd.xlane.f32.xlu0 %v1409
  %v1411 = vpop.xlane.xlu0 %1410
  %v1412 = vsel %vm1390, %v1355, 0.0
  %1413 = vadd.xlane.f32.xlu0 %v1412
  %v1414 = vpop.xlane.xlu0 %1413
  %v1415 = vsel %vm1390, %v1360, 0.0
  %1416 = vadd.xlane.f32.xlu0 %v1415
  %v1417 = vpop.xlane.xlu0 %1416
  %v1418 = vsel %vm1390, %v1363, 0.0
  %1419 = vadd.xlane.f32.xlu0 %v1418
  %v1420 = vpop.xlane.xlu0 %1419
  %v1421 = vsel %vm1390, %v1368, 0.0
  %1422 = vadd.xlane.f32.xlu0 %v1421
  %v1423 = vpop.xlane.xlu0 %1422
  %v1424 = vsel %vm1390, %v1371, 0.0
  %1425 = vadd.xlane.f32.xlu0 %v1424
  %v1426 = vpop.xlane.xlu0 %1425
  %v1427 = vsel %vm1390, %v1376, 0.0
  %1428 = vadd.xlane.f32.xlu0 %v1427
  %v1429 = vpop.xlane.xlu0 %1428
  %v1430 = vsel %vm1390, %v1379, 0.0
  %1431 = vadd.xlane.f32.xlu0 %v1430
  %v1432 = vpop.xlane.xlu0 %1431
  %v1433 = vsel %vm1390, %v1384, 0.0
  %1434 = vadd.xlane.f32.xlu0 %v1433
  %v1435 = vpop.xlane.xlu0 %1434
  %v1436 = vsel %vm1390, %v1387, 0.0
  %1437 = vadd.xlane.f32.xlu0 %v1436
  %v1438 = vpop.xlane.xlu0 %1437
  %v1439 = vmul.f32 %v1393, 0.020408163
  %v1440 = vmul.f32 %v1396, 0.020408163
  %v1441 = vmul.f32 %v1399, 0.020408163
  %v1442 = vmul.f32 %v1402, 0.020408163
  %v1443 = vmul.f32 %v1405, 0.020408163
  %v1444 = vmul.f32 %v1408, 0.020408163
  %v1445 = vmul.f32 %v1411, 0.020408163
  %v1446 = vmul.f32 %v1414, 0.020408163
  %v1447 = vmul.f32 %v1417, 0.020408163
  %v1448 = vmul.f32 %v1420, 0.020408163
  %v1449 = vmul.f32 %v1423, 0.020408163
  %v1450 = vmul.f32 %v1426, 0.020408163
  %v1451 = vmul.f32 %v1429, 0.020408163
  %v1452 = vmul.f32 %v1432, 0.020408163
  %v1453 = vmul.f32 %v1435, 0.020408163
  %v1454 = vmul.f32 %v1438, 0.020408163
  %v1455 = vmul.f32 %v1328, %v1328
  %v1456 = vmul.f32 %v1331, %v1331
  %v1457 = vmul.f32 %v1336, %v1336
  %v1458 = vmul.f32 %v1339, %v1339
  %v1459 = vmul.f32 %v1344, %v1344
  %v1460 = vmul.f32 %v1347, %v1347
  %v1461 = vmul.f32 %v1352, %v1352
  %v1462 = vmul.f32 %v1355, %v1355
  %v1463 = vmul.f32 %v1360, %v1360
  %v1464 = vmul.f32 %v1363, %v1363
  %v1465 = vmul.f32 %v1368, %v1368
  %v1466 = vmul.f32 %v1371, %v1371
  %v1467 = vmul.f32 %v1376, %v1376
  %v1468 = vmul.f32 %v1379, %v1379
  %v1469 = vmul.f32 %v1384, %v1384
  %v1470 = vmul.f32 %v1387, %v1387
  %v1471 = vsel %vm1390, %v1455, 0.0
  %1472 = vadd.xlane.f32.xlu0 %v1471
  %v1473 = vpop.xlane.xlu0 %1472
  %v1474 = vsel %vm1390, %v1456, 0.0
  %1475 = vadd.xlane.f32.xlu0 %v1474
  %v1476 = vpop.xlane.xlu0 %1475
  %v1477 = vsel %vm1390, %v1457, 0.0
  %1478 = vadd.xlane.f32.xlu0 %v1477
  %v1479 = vpop.xlane.xlu0 %1478
  %v1480 = vsel %vm1390, %v1458, 0.0
  %1481 = vadd.xlane.f32.xlu0 %v1480
  %v1482 = vpop.xlane.xlu0 %1481
  %v1483 = vsel %vm1390, %v1459, 0.0
  %1484 = vadd.xlane.f32.xlu0 %v1483
  %v1485 = vpop.xlane.xlu0 %1484
  %v1486 = vsel %vm1390, %v1460, 0.0
  %1487 = vadd.xlane.f32.xlu0 %v1486
  %v1488 = vpop.xlane.xlu0 %1487
  %v1489 = vsel %vm1390, %v1461, 0.0
  %1490 = vadd.xlane.f32.xlu0 %v1489
  %v1491 = vpop.xlane.xlu0 %1490
  %v1492 = vsel %vm1390, %v1462, 0.0
  %1493 = vadd.xlane.f32.xlu0 %v1492
  %v1494 = vpop.xlane.xlu0 %1493
  %v1495 = vsel %vm1390, %v1463, 0.0
  %1496 = vadd.xlane.f32.xlu0 %v1495
  %v1497 = vpop.xlane.xlu0 %1496
  %v1498 = vsel %vm1390, %v1464, 0.0
  %1499 = vadd.xlane.f32.xlu0 %v1498
  %v1500 = vpop.xlane.xlu0 %1499
  %v1501 = vsel %vm1390, %v1465, 0.0
  %1502 = vadd.xlane.f32.xlu0 %v1501
  %v1503 = vpop.xlane.xlu0 %1502
  %v1504 = vsel %vm1390, %v1466, 0.0
  %1505 = vadd.xlane.f32.xlu0 %v1504
  %v1506 = vpop.xlane.xlu0 %1505
  %v1507 = vsel %vm1390, %v1467, 0.0
  %1508 = vadd.xlane.f32.xlu0 %v1507
  %v1509 = vpop.xlane.xlu0 %1508
  %v1510 = vsel %vm1390, %v1468, 0.0
  %1511 = vadd.xlane.f32.xlu0 %v1510
  %v1512 = vpop.xlane.xlu0 %1511
  %v1513 = vsel %vm1390, %v1469, 0.0
  %1514 = vadd.xlane.f32.xlu0 %v1513
  %v1515 = vpop.xlane.xlu0 %1514
  %v1516 = vsel %vm1390, %v1470, 0.0
  %1517 = vadd.xlane.f32.xlu0 %v1516
  %v1518 = vpop.xlane.xlu0 %1517
  %v1519 = vmul.f32 %v1473, 0.020408163
  %v1520 = vmul.f32 %v1476, 0.020408163
  %v1521 = vmul.f32 %v1479, 0.020408163
  %v1522 = vmul.f32 %v1482, 0.020408163
  %v1523 = vmul.f32 %v1485, 0.020408163
  %v1524 = vmul.f32 %v1488, 0.020408163
  %v1525 = vmul.f32 %v1491, 0.020408163
  %v1526 = vmul.f32 %v1494, 0.020408163
  %v1527 = vmul.f32 %v1497, 0.020408163
  %v1528 = vmul.f32 %v1500, 0.020408163
  %v1529 = vmul.f32 %v1503, 0.020408163
  %v1530 = vmul.f32 %v1506, 0.020408163
  %v1531 = vmul.f32 %v1509, 0.020408163
  %v1532 = vmul.f32 %v1512, 0.020408163
  %v1533 = vmul.f32 %v1515, 0.020408163
  %v1534 = vmul.f32 %v1518, 0.020408163
  %v1535 = vmul.f32 %v1439, %v1439
  %v1536 = vmul.f32 %v1440, %v1440
  %v1537 = vmul.f32 %v1441, %v1441
  %v1538 = vmul.f32 %v1442, %v1442
  %v1539 = vmul.f32 %v1443, %v1443
  %v1540 = vmul.f32 %v1444, %v1444
  %v1541 = vmul.f32 %v1445, %v1445
  %v1542 = vmul.f32 %v1446, %v1446
  %v1543 = vmul.f32 %v1447, %v1447
  %v1544 = vmul.f32 %v1448, %v1448
  %v1545 = vmul.f32 %v1449, %v1449
  %v1546 = vmul.f32 %v1450, %v1450
  %v1547 = vmul.f32 %v1451, %v1451
  %v1548 = vmul.f32 %v1452, %v1452
  %v1549 = vmul.f32 %v1453, %v1453
  %v1550 = vmul.f32 %v1454, %v1454
  %v1551 = vsub.f32 %v1519, %v1535
  %v1552 = vsub.f32 %v1520, %v1536
  %v1553 = vsub.f32 %v1521, %v1537
  %v1554 = vsub.f32 %v1522, %v1538
  %v1555 = vsub.f32 %v1523, %v1539
  %v1556 = vsub.f32 %v1524, %v1540
  %v1557 = vsub.f32 %v1525, %v1541
  %v1558 = vsub.f32 %v1526, %v1542
  %v1559 = vsub.f32 %v1527, %v1543
  %v1560 = vsub.f32 %v1528, %v1544
  %v1561 = vsub.f32 %v1529, %v1545
  %v1562 = vsub.f32 %v1530, %v1546
  %v1563 = vsub.f32 %v1531, %v1547
  %v1564 = vsub.f32 %v1532, %v1548
  %v1565 = vsub.f32 %v1533, %v1549
  %v1566 = vsub.f32 %v1534, %v1550
  %v1567 = vadd.f32 %v1551, 1e-05
  %v1568 = vadd.f32 %v1552, 1e-05
  %v1569 = vadd.f32 %v1553, 1e-05
  %v1570 = vadd.f32 %v1554, 1e-05
  %v1571 = vadd.f32 %v1555, 1e-05
  %v1572 = vadd.f32 %v1556, 1e-05
  %v1573 = vadd.f32 %v1557, 1e-05
  %v1574 = vadd.f32 %v1558, 1e-05
  %v1575 = vadd.f32 %v1559, 1e-05
  %v1576 = vadd.f32 %v1560, 1e-05
  %v1577 = vadd.f32 %v1561, 1e-05
  %v1578 = vadd.f32 %v1562, 1e-05
  %v1579 = vadd.f32 %v1563, 1e-05
  %v1580 = vadd.f32 %v1564, 1e-05
  %v1581 = vadd.f32 %v1565, 1e-05
  %v1582 = vadd.f32 %v1566, 1e-05
  %v1583 = vrsqrt.pop %v1567
  %v1584 = vrsqrt.pop %v1568
  %v1585 = vrsqrt.pop %v1569
  %v1586 = vrsqrt.pop %v1570
  %v1587 = vrsqrt.pop %v1571
  %v1588 = vrsqrt.pop %v1572
  %v1589 = vrsqrt.pop %v1573
  %v1590 = vrsqrt.pop %v1574
  %v1591 = vrsqrt.pop %v1575
  %v1592 = vrsqrt.pop %v1576
  %v1593 = vrsqrt.pop %v1577
  %v1594 = vrsqrt.pop %v1578
  %v1595 = vrsqrt.pop %v1579
  %v1596 = vrsqrt.pop %v1580
  %v1597 = vrsqrt.pop %v1581
  %v1598 = vrsqrt.pop %v1582
  %v1599 = vld [vmem:[%s2] sm:$0xff]
  %v1600 = vld [vmem:[%s2 + $0x8] sm:$0xff]
  %v1601 = vld [vmem:[%s2 + $0x10] sm:$0xff]
  %v1602 = vld [vmem:[%s2 + $0x18] sm:$0xff]
  %v1603 = vld [vmem:[%s2 + $0x20] sm:$0xff]
  %v1604 = vld [vmem:[%s2 + $0x28] sm:$0xff]
  %v1605 = vld [vmem:[%s2 + $0x30] sm:$0xff]
  %v1606 = vld [vmem:[%s2 + $0x38] sm:$0xff]
  %v1607 = vld [vmem:[%s2 + $0x40] sm:$0xff]
  %v1608 = vld [vmem:[%s2 + $0x48] sm:$0xff]
  %v1609 = vld [vmem:[%s2 + $0x50] sm:$0xff]
  %v1610 = vld [vmem:[%s2 + $0x58] sm:$0xff]
  %v1611 = vld [vmem:[%s2 + $0x60] sm:$0xff]
  %v1612 = vld [vmem:[%s2 + $0x68] sm:$0xff]
  %v1613 = vld [vmem:[%s2 + $0x70] sm:$0xff]
  %v1614 = vld [vmem:[%s2 + $0x78] sm:$0xff]
  %v1615 = vmul.f32 %v1599, %v1583
  %v1616 = vmul.f32 %v1600, %v1584
  %v1617 = vmul.f32 %v1601, %v1585
  %v1618 = vmul.f32 %v1602, %v1586
  %v1619 = vmul.f32 %v1603, %v1587
  %v1620 = vmul.f32 %v1604, %v1588
  %v1621 = vmul.f32 %v1605, %v1589
  %v1622 = vmul.f32 %v1606, %v1590
  %v1623 = vmul.f32 %v1607, %v1591
  %v1624 = vmul.f32 %v1608, %v1592
  %v1625 = vmul.f32 %v1609, %v1593
  %v1626 = vmul.f32 %v1610, %v1594
  %v1627 = vmul.f32 %v1611, %v1595
  %v1628 = vmul.f32 %v1612, %v1596
  %v1629 = vmul.f32 %v1613, %v1597
  %v1630 = vmul.f32 %v1614, %v1598
  %v1631 = vld [vmem:[%s3] sm:$0xff]
  %v1632 = vld [vmem:[%s3 + $0x8] sm:$0xff]
  %v1633 = vld [vmem:[%s3 + $0x10] sm:$0xff]
  %v1634 = vld [vmem:[%s3 + $0x18] sm:$0xff]
  %v1635 = vld [vmem:[%s3 + $0x20] sm:$0xff]
  %v1636 = vld [vmem:[%s3 + $0x28] sm:$0xff]
  %v1637 = vld [vmem:[%s3 + $0x30] sm:$0xff]
  %v1638 = vld [vmem:[%s3 + $0x38] sm:$0xff]
  %v1639 = vld [vmem:[%s3 + $0x40] sm:$0xff]
  %v1640 = vld [vmem:[%s3 + $0x48] sm:$0xff]
  %v1641 = vld [vmem:[%s3 + $0x50] sm:$0xff]
  %v1642 = vld [vmem:[%s3 + $0x58] sm:$0xff]
  %v1643 = vld [vmem:[%s3 + $0x60] sm:$0xff]
  %v1644 = vld [vmem:[%s3 + $0x68] sm:$0xff]
  %v1645 = vld [vmem:[%s3 + $0x70] sm:$0xff]
  %v1646 = vld [vmem:[%s3 + $0x78] sm:$0xff]
  %v1647 = vmul.f32 %v1439, %v1615
  %v1648 = vmul.f32 %v1440, %v1616
  %v1649 = vmul.f32 %v1441, %v1617
  %v1650 = vmul.f32 %v1442, %v1618
  %v1651 = vmul.f32 %v1443, %v1619
  %v1652 = vmul.f32 %v1444, %v1620
  %v1653 = vmul.f32 %v1445, %v1621
  %v1654 = vmul.f32 %v1446, %v1622
  %v1655 = vmul.f32 %v1447, %v1623
  %v1656 = vmul.f32 %v1448, %v1624
  %v1657 = vmul.f32 %v1449, %v1625
  %v1658 = vmul.f32 %v1450, %v1626
  %v1659 = vmul.f32 %v1451, %v1627
  %v1660 = vmul.f32 %v1452, %v1628
  %v1661 = vmul.f32 %v1453, %v1629
  %v1662 = vmul.f32 %v1454, %v1630
  %v1663 = vsub.f32 %v1631, %v1647
  %v1664 = vsub.f32 %v1632, %v1648
  %v1665 = vsub.f32 %v1633, %v1649
  %v1666 = vsub.f32 %v1634, %v1650
  %v1667 = vsub.f32 %v1635, %v1651
  %v1668 = vsub.f32 %v1636, %v1652
  %v1669 = vsub.f32 %v1637, %v1653
  %v1670 = vsub.f32 %v1638, %v1654
  %v1671 = vsub.f32 %v1639, %v1655
  %v1672 = vsub.f32 %v1640, %v1656
  %v1673 = vsub.f32 %v1641, %v1657
  %v1674 = vsub.f32 %v1642, %v1658
  %v1675 = vsub.f32 %v1643, %v1659
  %v1676 = vsub.f32 %v1644, %v1660
  %v1677 = vsub.f32 %v1645, %v1661
  %v1678 = vsub.f32 %v1646, %v1662
  %1680 = vset.pattern.permute.xlu0 0
  %1681 = vperm.xlu0 %1680, %v1615
  %v1682 = vpop.permute.xlu0 %1681
  %1685 = vset.pattern.permute.xlu0 0
  %1686 = vperm.xlu0 %1685, %v1616
  %v1687 = vpop.permute.xlu0 %1686
  %1690 = vset.pattern.permute.xlu0 0
  %1691 = vperm.xlu0 %1690, %v1617
  %v1692 = vpop.permute.xlu0 %1691
  %1695 = vset.pattern.permute.xlu0 0
  %1696 = vperm.xlu0 %1695, %v1618
  %v1697 = vpop.permute.xlu0 %1696
  %1700 = vset.pattern.permute.xlu0 0
  %1701 = vperm.xlu0 %1700, %v1619
  %v1702 = vpop.permute.xlu0 %1701
  %1705 = vset.pattern.permute.xlu0 0
  %1706 = vperm.xlu0 %1705, %v1620
  %v1707 = vpop.permute.xlu0 %1706
  %1710 = vset.pattern.permute.xlu0 0
  %1711 = vperm.xlu0 %1710, %v1621
  %v1712 = vpop.permute.xlu0 %1711
  %1715 = vset.pattern.permute.xlu0 0
  %1716 = vperm.xlu0 %1715, %v1622
  %v1717 = vpop.permute.xlu0 %1716
  %1720 = vset.pattern.permute.xlu0 0
  %1721 = vperm.xlu0 %1720, %v1623
  %v1722 = vpop.permute.xlu0 %1721
  %1725 = vset.pattern.permute.xlu0 0
  %1726 = vperm.xlu0 %1725, %v1624
  %v1727 = vpop.permute.xlu0 %1726
  %1730 = vset.pattern.permute.xlu0 0
  %1731 = vperm.xlu0 %1730, %v1625
  %v1732 = vpop.permute.xlu0 %1731
  %1735 = vset.pattern.permute.xlu0 0
  %1736 = vperm.xlu0 %1735, %v1626
  %v1737 = vpop.permute.xlu0 %1736
  %1740 = vset.pattern.permute.xlu0 0
  %1741 = vperm.xlu0 %1740, %v1627
  %v1742 = vpop.permute.xlu0 %1741
  %1745 = vset.pattern.permute.xlu0 0
  %1746 = vperm.xlu0 %1745, %v1628
  %v1747 = vpop.permute.xlu0 %1746
  %1750 = vset.pattern.permute.xlu0 0
  %1751 = vperm.xlu0 %1750, %v1629
  %v1752 = vpop.permute.xlu0 %1751
  %1755 = vset.pattern.permute.xlu0 0
  %1756 = vperm.xlu0 %1755, %v1630
  %v1757 = vpop.permute.xlu0 %1756
  %v1759 = vmul.f32 %v1328, %v1682
  %v1760 = vmul.f32 %v1331, %v1687
  %v1761 = vmul.f32 %v1336, %v1692
  %v1762 = vmul.f32 %v1339, %v1697
  %v1763 = vmul.f32 %v1344, %v1702
  %v1764 = vmul.f32 %v1347, %v1707
  %v1765 = vmul.f32 %v1352, %v1712
  %v1766 = vmul.f32 %v1355, %v1717
  %v1767 = vmul.f32 %v1360, %v1722
  %v1768 = vmul.f32 %v1363, %v1727
  %v1769 = vmul.f32 %v1368, %v1732
  %v1770 = vmul.f32 %v1371, %v1737
  %v1771 = vmul.f32 %v1376, %v1742
  %v1772 = vmul.f32 %v1379, %v1747
  %v1773 = vmul.f32 %v1384, %v1752
  %v1774 = vmul.f32 %v1387, %v1757
  %1776 = vset.pattern.permute.xlu0 0
  %1777 = vperm.xlu0 %1776, %v1663
  %v1778 = vpop.permute.xlu0 %1777
  %1781 = vset.pattern.permute.xlu0 0
  %1782 = vperm.xlu0 %1781, %v1664
  %v1783 = vpop.permute.xlu0 %1782
  %1786 = vset.pattern.permute.xlu0 0
  %1787 = vperm.xlu0 %1786, %v1665
  %v1788 = vpop.permute.xlu0 %1787
  %1791 = vset.pattern.permute.xlu0 0
  %1792 = vperm.xlu0 %1791, %v1666
  %v1793 = vpop.permute.xlu0 %1792
  %1796 = vset.pattern.permute.xlu0 0
  %1797 = vperm.xlu0 %1796, %v1667
  %v1798 = vpop.permute.xlu0 %1797
  %1801 = vset.pattern.permute.xlu0 0
  %1802 = vperm.xlu0 %1801, %v1668
  %v1803 = vpop.permute.xlu0 %1802
  %1806 = vset.pattern.permute.xlu0 0
  %1807 = vperm.xlu0 %1806, %v1669
  %v1808 = vpop.permute.xlu0 %1807
  %1811 = vset.pattern.permute.xlu0 0
  %1812 = vperm.xlu0 %1811, %v1670
  %v1813 = vpop.permute.xlu0 %1812
  %1816 = vset.pattern.permute.xlu0 0
  %1817 = vperm.xlu0 %1816, %v1671
  %v1818 = vpop.permute.xlu0 %1817
  %1821 = vset.pattern.permute.xlu0 0
  %1822 = vperm.xlu0 %1821, %v1672
  %v1823 = vpop.permute.xlu0 %1822
  %1826 = vset.pattern.permute.xlu0 0
  %1827 = vperm.xlu0 %1826, %v1673
  %v1828 = vpop.permute.xlu0 %1827
  %1831 = vset.pattern.permute.xlu0 0
  %1832 = vperm.xlu0 %1831, %v1674
  %v1833 = vpop.permute.xlu0 %1832
  %1836 = vset.pattern.permute.xlu0 0
  %1837 = vperm.xlu0 %1836, %v1675
  %v1838 = vpop.permute.xlu0 %1837
  %1841 = vset.pattern.permute.xlu0 0
  %1842 = vperm.xlu0 %1841, %v1676
  %v1843 = vpop.permute.xlu0 %1842
  %1846 = vset.pattern.permute.xlu0 0
  %1847 = vperm.xlu0 %1846, %v1677
  %v1848 = vpop.permute.xlu0 %1847
  %1851 = vset.pattern.permute.xlu0 0
  %1852 = vperm.xlu0 %1851, %v1678
  %v1853 = vpop.permute.xlu0 %1852
  %v1855 = vadd.f32 %v1759, %v1778
  %v1856 = vadd.f32 %v1760, %v1783
  %v1857 = vadd.f32 %v1761, %v1788
  %v1858 = vadd.f32 %v1762, %v1793
  %v1859 = vadd.f32 %v1763, %v1798
  %v1860 = vadd.f32 %v1764, %v1803
  %v1861 = vadd.f32 %v1765, %v1808
  %v1862 = vadd.f32 %v1766, %v1813
  %v1863 = vadd.f32 %v1767, %v1818
  %v1864 = vadd.f32 %v1768, %v1823
  %v1865 = vadd.f32 %v1769, %v1828
  %v1866 = vadd.f32 %v1770, %v1833
  %v1867 = vadd.f32 %v1771, %v1838
  %v1868 = vadd.f32 %v1772, %v1843
  %v1869 = vadd.f32 %v1773, %v1848
  %v1870 = vadd.f32 %v1774, %v1853
  %1871 = vst.msk [vmem:[%s4] sm:$0xff] %vm1390, %v1855
  %1872 = vst.msk [vmem:[%s4 + $0x8] sm:$0xff] %vm1390, %v1856
  %1873 = vst.msk [vmem:[%s4 + $0x10] sm:$0xff] %vm1390, %v1857
  %1874 = vst.msk [vmem:[%s4 + $0x18] sm:$0xff] %vm1390, %v1858
  %1875 = vst.msk [vmem:[%s4 + $0x20] sm:$0xff] %vm1390, %v1859
  %1876 = vst.msk [vmem:[%s4 + $0x28] sm:$0xff] %vm1390, %v1860
  %1877 = vst.msk [vmem:[%s4 + $0x30] sm:$0xff] %vm1390, %v1861
  %1878 = vst.msk [vmem:[%s4 + $0x38] sm:$0xff] %vm1390, %v1862
  %1879 = vst.msk [vmem:[%s4 + $0x40] sm:$0xff] %vm1390, %v1863
  %1880 = vst.msk [vmem:[%s4 + $0x48] sm:$0xff] %vm1390, %v1864
  %1881 = vst.msk [vmem:[%s4 + $0x50] sm:$0xff] %vm1390, %v1865
  %1882 = vst.msk [vmem:[%s4 + $0x58] sm:$0xff] %vm1390, %v1866
  %1883 = vst.msk [vmem:[%s4 + $0x60] sm:$0xff] %vm1390, %v1867
  %1884 = vst.msk [vmem:[%s4 + $0x68] sm:$0xff] %vm1390, %v1868
  %1885 = vst.msk [vmem:[%s4 + $0x70] sm:$0xff] %vm1390, %v1869
  %1886 = vst.msk [vmem:[%s4 + $0x78] sm:$0xff] %vm1390, %v1870
  // Predicated region
  $region18: #{relu_conv1x1_bn.1} parent=0 // pred_check
    _
  $region19: #{relu_conv1x1_bn.1} parent=0 // pred_check_branch
    %1888 = sbr.rel (0) target = $region21
  $region20: #{relu_conv1x1_bn.1} parent=0 // pred_region
    _
  $region21: #{relu_conv1x1_bn.1} parent=0 // pred_fallthru
    _
  // Predicated region
  $region22: #{relu_conv1x1_bn.1} parent=0 // pred_check
    _
  $region23: #{relu_conv1x1_bn.1} parent=0 // pred_check_branch
    %1890 = sbr.rel (0) target = $region25
  $region24: #{relu_conv1x1_bn.1} parent=0 // pred_region
    _
  $region25: #{relu_conv1x1_bn.1} parent=0 // pred_fallthru
    _

</llo_original>
